<compile_context>
chip_gen: v7x
topology: tpu7x:2x2x1
jax: 0.10.0
libtpu: 0.0.40
codegen_flags: <defaults>
</compile_context>

<pallas_src>
import jax
import jax.numpy as jnp
from jax.experimental import pallas as pl
from jax.experimental.pallas import tpu as pltpu

H = 768          # hidden size (fixed by the module: Linear(768, 768))
NUM_CLASSES = 4
C_PAD = 128      # class dim padded to one lane-width for an unmasked store
TB_MAX = 1024    # max batch tile (keeps buffers well under scoped VMEM on v5e/v6e/v7x)


def _round_up(x, m):
    return ((x + m - 1) // m) * m


def _pick_batch_tile(batch):
    """Batch tile: multiple of 8 (sublanes); for large batches a multiple of
    256 (MXU-native), capped at TB_MAX, and sized so the grid has >= 2 steps
    once batch > 256 so the 'parallel' axis shards across both TensorCores on
    v7x (one extra weight DMA is the only cost of splitting)."""
    if batch <= 256:
        return _round_up(batch, 8)
    return min(TB_MAX, _round_up((batch + 1) // 2, 256))


def _head_kernel(x_ref, w1_ref, b1_ref, w2_ref, b2_ref, o_ref):
    # x_ref : (TB, H)     CLS activations (native dtype) for this batch tile
    # w1_ref: (H, H)      bf16 pre_classifier weight ([in, out] layout)
    # b1_ref: (1, H)      f32  pre_classifier bias
    # w2_ref: (H, C_PAD)  bf16 classifier weight, out-dim padded to 128 lanes
    # b2_ref: (1, C_PAD)  f32  classifier bias, padded
    # o_ref : (TB, C_PAD) f32  padded logits
    x = x_ref[...].astype(jnp.bfloat16)          # in-kernel cast (VPU, hides under MXU)
    h = jnp.dot(x, w1_ref[...],
                preferred_element_type=jnp.float32) + b1_ref[...]
    h = jnp.maximum(h, 0.0)                      # ReLU
    # Dropout(p=0.3): identity in eval/inference mode.
    h = h.astype(jnp.bfloat16)                   # back to bf16 for the MXU
    out = jnp.dot(h, w2_ref[...],
                  preferred_element_type=jnp.float32) + b2_ref[...]
    o_ref[...] = out.astype(o_ref.dtype)


def prepare_params(w1, b1, w2, b2):
    """One-time parameter preparation (hoisted out of the forward path):
    cast weights to bf16, pad the classifier out-dim to C_PAD lanes, reshape
    biases to 2-D f32 rows.

    NOTE: expects weights in [in, out] layout (the kernel computes x @ w).
    A real PyTorch nn.Linear checkpoint stores weight as [out, in]; pass
    `weight.T` for w1/w2 when loading such a checkpoint."""
    w1_bf = w1.astype(jnp.bfloat16)                               # (H, H)
    b1_2d = b1.reshape(1, H).astype(jnp.float32)                  # (1, H)
    w2_p = (jnp.zeros((H, C_PAD), jnp.bfloat16)
            .at[:, :NUM_CLASSES].set(w2.astype(jnp.bfloat16)))    # (H, 128)
    b2_p = (jnp.zeros((1, C_PAD), jnp.float32)
            .at[0, :NUM_CLASSES].set(b2.astype(jnp.float32)))     # (1, 128)
    return w1_bf, b1_2d, w2_p, b2_p


@jax.jit
def article_classifier_head(last_hidden_state, params):
    """last_hidden_state: (B, S, H) BERT output (any float dtype).
    params: output of prepare_params.  Returns (B, NUM_CLASSES) f32 logits."""
    w1_bf, b1_2d, w2_p, b2_p = params
    B, S, Hh = last_hidden_state.shape
    assert Hh == H

    TB = _pick_batch_tile(B)
    grid = (pl.cdiv(B, TB),)     # ragged last block is masked by Pallas

    # Layout-preserving view (bitcast, no copy): in row b of the (B, S*H)
    # view, columns [0, H) are exactly the CLS token hidden_state[b, 0, :].
    hs2d = last_hidden_state.reshape(B, S * H)

    out_padded = pl.pallas_call(
        _head_kernel,
        out_shape=jax.ShapeDtypeStruct((B, C_PAD), jnp.float32),
        grid_spec=pltpu.PrefetchScalarGridSpec(
            num_scalar_prefetch=0,
            grid=grid,
            in_specs=[
                # CLS gather: first H lanes of each (S*H)-wide row -> the DMA
                # pulls only seq position 0 per batch row (3 KB contiguous
                # each); nothing else of (B, S, H) ever enters VMEM.
                pl.BlockSpec((TB, H), lambda i: (i, 0)),
                # weights/biases: constant index_map -> VMEM-resident, re-DMA
                # is elided after the first grid step.
                pl.BlockSpec((H, H), lambda i: (0, 0)),
                pl.BlockSpec((1, H), lambda i: (0, 0)),
                pl.BlockSpec((H, C_PAD), lambda i: (0, 0)),
                pl.BlockSpec((1, C_PAD), lambda i: (0, 0)),
            ],
            out_specs=pl.BlockSpec((TB, C_PAD), lambda i: (i, 0)),
        ),
        compiler_params=pltpu.CompilerParams(
            # independent batch tiles -> shard across both TensorCores on v7x
            # (no-op on v5e/v6e).  Default scoped VMEM is sufficient for
            # TB <= 1024; raise vmem_limit_bytes only if TB is pushed higher.
            dimension_semantics=("parallel",)),
    )(hs2d, w1_bf, b1_2d, w2_p, b2_p)

    return out_padded[:, :NUM_CLASSES]


def init_params(key):
    """Deterministic PyTorch-style Linear init: U(-1/sqrt(fan_in), 1/sqrt(fan_in)).
    Stored as [in, out] so the kernel computes x @ w."""
    k1, k2, k3, k4 = jax.random.split(key, 4)
    bound = 1.0 / (H ** 0.5)
    w1 = jax.random.uniform(k1, (H, H), jnp.float32, -bound, bound)
    b1 = jax.random.uniform(k2, (H,), jnp.float32, -bound, bound)
    w2 = jax.random.uniform(k3, (H, NUM_CLASSES), jnp.float32, -bound, bound)
    b2 = jax.random.uniform(k4, (NUM_CLASSES,), jnp.float32, -bound, bound)
    return w1, b1, w2, b2


def fake_bert(input_ids, attention_mask, key):
    """Stand-in for the external BERT base model (see TODO(synk) above).
    Deterministic embedding lookup producing last_hidden_state (B, S, H)."""
    vocab = 100
    emb = jax.random.normal(key, (vocab, H), jnp.float32) * 0.02
    hidden = emb[input_ids]                                   # (B, S, H)
    hidden = hidden * attention_mask[..., None].astype(jnp.float32)
    return hidden


if __name__ == "__main__":
    B, S = 2, 8
    key = jax.random.PRNGKey(0)
    k_ids, k_bert, k_params = jax.random.split(key, 3)

    input_ids = jax.random.randint(k_ids, (B, S), 0, 100, dtype=jnp.int32)
    attention_mask = jnp.ones((B, S), dtype=jnp.int32)

    hidden_state = fake_bert(input_ids, attention_mask, k_bert)   # (B, S, 768)
    w1, b1, w2, b2 = init_params(k_params)
    params = prepare_params(w1, b1, w2, b2)                       # one-time prep

    logits = article_classifier_head(hidden_state, params)
    logits = jax.block_until_ready(logits)

    # Reference check in plain JAX (f32); kernel uses bf16 MXU inputs with
    # f32 accumulation, so allow a slightly looser tolerance.
    pooled = hidden_state[:, 0, :]                                # (B, 768)
    ref = jnp.maximum(pooled @ w1 + b1, 0.0) @ w2 + b2
    assert logits.shape == (B, NUM_CLASSES)
    assert jnp.allclose(logits, ref, atol=1e-2, rtol=1e-2), (
        float(jnp.max(jnp.abs(logits - ref))))

    print("KERNEL_OK")
</pallas_src>

<mosaic_0001>
module attributes {stable_mosaic.version = 11 : i64} {
  func.func @_head_kernel(%arg0: i32, %arg1: memref<8x768xf32, #tpu.memory_space<vmem>>, %arg2: memref<768x768xbf16, #tpu.memory_space<vmem>>, %arg3: memref<1x768xf32, #tpu.memory_space<vmem>>, %arg4: memref<768x128xbf16, #tpu.memory_space<vmem>>, %arg5: memref<1x128xf32, #tpu.memory_space<vmem>>, %arg6: memref<8x128xf32, #tpu.memory_space<vmem>>) attributes {dimension_semantics = [#tpu.dimension_semantics<parallel>], iteration_bounds = array<i64: 1>, scalar_prefetch = 0 : i64, scratch_operands = 0 : i64, tpu.core_type = #tpu.core_type<tc>, window_params = [{transform_indices = @transform_0, window_bounds = array<i64: 8, 768>}, {pipeline_mode = #tpu.pipeline_mode<synchronous>, transform_indices = @transform_1, window_bounds = array<i64: 768, 768>}, {pipeline_mode = #tpu.pipeline_mode<synchronous>, transform_indices = @transform_2, window_bounds = array<i64: 1, 768>}, {pipeline_mode = #tpu.pipeline_mode<synchronous>, transform_indices = @transform_3, window_bounds = array<i64: 768, 128>}, {pipeline_mode = #tpu.pipeline_mode<synchronous>, transform_indices = @transform_4, window_bounds = array<i64: 1, 128>}, {transform_indices = @transform_5, window_bounds = array<i64: 8, 128>}]} {
    %c0 = arith.constant 0 : index
    %c0_0 = arith.constant 0 : index
    %0 = vector.load %arg1[%c0, %c0_0] : memref<8x768xf32, #tpu.memory_space<vmem>>, vector<8x768xf32>
    %1 = arith.truncf %0 : vector<8x768xf32> to vector<8x768xbf16>
    %c0_1 = arith.constant 0 : index
    %c0_2 = arith.constant 0 : index
    %2 = vector.load %arg2[%c0_1, %c0_2] : memref<768x768xbf16, #tpu.memory_space<vmem>>, vector<768x768xbf16>
    %cst = arith.constant dense<0.000000e+00> : vector<8x768xf32>
    %3 = tpu.matmul %1, %2, %cst {dimension_numbers = #tpu.dot_dimension_numbers<[1], [0], [0], [1], [0, 0, 1, 1], [], []>} : vector<8x768xbf16>, vector<768x768xbf16>, vector<8x768xf32> -> vector<8x768xf32>
    %c0_3 = arith.constant 0 : index
    %c0_4 = arith.constant 0 : index
    %4 = vector.load %arg3[%c0_3, %c0_4] : memref<1x768xf32, #tpu.memory_space<vmem>>, vector<1x768xf32>
    %5 = vector.broadcast %4 : vector<1x768xf32> to vector<8x768xf32>
    %6 = arith.addf %3, %5 : vector<8x768xf32>
    %cst_5 = arith.constant 0.000000e+00 : f32
    %7 = vector.broadcast %cst_5 : f32 to vector<8x768xf32>
    %8 = arith.maximumf %6, %7 : vector<8x768xf32>
    %9 = arith.truncf %8 : vector<8x768xf32> to vector<8x768xbf16>
    %c0_6 = arith.constant 0 : index
    %c0_7 = arith.constant 0 : index
    %10 = vector.load %arg4[%c0_6, %c0_7] : memref<768x128xbf16, #tpu.memory_space<vmem>>, vector<768x128xbf16>
    %cst_8 = arith.constant dense<0.000000e+00> : vector<8x128xf32>
    %11 = tpu.matmul %9, %10, %cst_8 {dimension_numbers = #tpu.dot_dimension_numbers<[1], [0], [0], [1], [0, 0, 1, 1], [], []>} : vector<8x768xbf16>, vector<768x128xbf16>, vector<8x128xf32> -> vector<8x128xf32>
    %c0_9 = arith.constant 0 : index
    %c0_10 = arith.constant 0 : index
    %12 = vector.load %arg5[%c0_9, %c0_10] : memref<1x128xf32, #tpu.memory_space<vmem>>, vector<1x128xf32>
    %13 = vector.broadcast %12 : vector<1x128xf32> to vector<8x128xf32>
    %14 = arith.addf %11, %13 : vector<8x128xf32>
    %c0_11 = arith.constant 0 : index
    %c0_12 = arith.constant 0 : index
    %15 = vector.load %arg6[%c0_11, %c0_12] : memref<8x128xf32, #tpu.memory_space<vmem>>, vector<8x128xf32>
    tpu.vector_store %arg6[%c0_11, %c0_12], %14 {strides = array<i32>} : memref<8x128xf32, #tpu.memory_space<vmem>>, vector<8x128xf32>,
    return
  }
  func.func @transform_0(%arg0: i32) -> (i32, i32) {
    %c0_i32 = arith.constant 0 : i32
    %c0_i32_0 = arith.constant 0 : i32
    return %arg0, %c0_i32 : i32, i32
  }
  func.func @transform_1(%arg0: i32) -> (i32, i32) {
    %c0_i32 = arith.constant 0 : i32
    %c0_i32_0 = arith.constant 0 : i32
    %c0_i32_1 = arith.constant 0 : i32
    return %c0_i32, %c0_i32_0 : i32, i32
  }
  func.func @transform_2(%arg0: i32) -> (i32, i32) {
    %c0_i32 = arith.constant 0 : i32
    %c0_i32_0 = arith.constant 0 : i32
    %c0_i32_1 = arith.constant 0 : i32
    return %c0_i32, %c0_i32_0 : i32, i32
  }
  func.func @transform_3(%arg0: i32) -> (i32, i32) {
    %c0_i32 = arith.constant 0 : i32
    %c0_i32_0 = arith.constant 0 : i32
    %c0_i32_1 = arith.constant 0 : i32
    return %c0_i32, %c0_i32_0 : i32, i32
  }
  func.func @transform_4(%arg0: i32) -> (i32, i32) {
    %c0_i32 = arith.constant 0 : i32
    %c0_i32_0 = arith.constant 0 : i32
    %c0_i32_1 = arith.constant 0 : i32
    return %c0_i32, %c0_i32_0 : i32, i32
  }
  func.func @transform_5(%arg0: i32) -> (i32, i32) {
    %c0_i32 = arith.constant 0 : i32
    %c0_i32_0 = arith.constant 0 : i32
    return %arg0, %c0_i32 : i32, i32
  }
}

</mosaic_0001>

<llo_original>
// kernel: article_classifier_head.1
$region0: #{article_classifier_head.1}
  #allocation0 [shape = 'u32[]', space=smem, size = 0x4, offset = 0x4, fixed_abs, tag = 'smem constant byte address 0x4 - core index']
  #allocation1 [shape = 'u32[144,128]{1,0:T(1,128)}', space=vmem, size = 0x12000, scoped, tag = 'internal scratch']
  %s0 = inlined_call_operand.vmem [shape: f32[2,6144], index: 0, kind: input, shape index: {}]
  %s1 = inlined_call_operand.hbm [shape: bf16[768,768], index: 1, kind: input, shape index: {}]
  %s2 = inlined_call_operand.hbm [shape: f32[1,768], index: 2, kind: input, shape index: {}]
  %s3 = inlined_call_operand.hbm [shape: bf16[768,128], index: 3, kind: input, shape index: {}]
  %s4 = inlined_call_operand.hbm [shape: f32[1,128], index: 4, kind: input, shape index: {}]
  %s5 = inlined_call_operand.hbm [shape: f32[2,128], index: 5, kind: output, shape index: {}]
  %s6 = sld [smem:[#allocation0]]
  $region72: #{article_classifier_head.1} parent=0
    _
  %s8 = ssub.s32 1, %s6
  %s9 = scalar_select 0, %s8, %s6
  $region1: #{article_classifier_head.1} parent=0
    #allocation2 [shape = 'u8[24576]{0}', space=vmem, size = 0x6000, scoped, tag = 'input window, operand 0, single buffered']
    #allocation3 [shape = 'u8[1179648]{0}', space=vmem, size = 0x120000, scoped, tag = 'input window, operand 1, single buffered']
    #allocation4 [shape = 's32[1]{0}', space=sflag, size = 0x4, scoped, tag = 'scoped memory for article_classifier_head.1']
    #allocation5 [shape = 's32[1]{0}', space=sflag, size = 0x4, scoped, tag = 'scoped memory for article_classifier_head.1']
    #allocation6 [shape = 'u8[3072]{0}', space=vmem, size = 0xc00, scoped, tag = 'input window, operand 2, single buffered']
    #allocation7 [shape = 's32[1]{0}', space=sflag, size = 0x4, scoped, tag = 'scoped memory for article_classifier_head.1']
    #allocation8 [shape = 'u8[196608]{0}', space=vmem, size = 0x30000, scoped, tag = 'input window, operand 3, single buffered']
    #allocation9 [shape = 'u8[512]{0}', space=vmem, size = 0x400, scoped, tag = 'input window, operand 4, single buffered']
    #allocation10 [shape = 's32[1]{0}', space=sflag, size = 0x4, scoped, tag = 'scoped memory for article_classifier_head.1']
    #allocation11 [shape = 'u8[4096]{0}', space=vmem, size = 0x1000, scoped, tag = 'output window, operand 0, single buffered']
    %10 = vsyncpa [#allocation4], 0
    %11 = vsyncpa [#allocation7], 0
    %12 = vsyncpa [#allocation10], 0
    %13 = vsyncpa [#allocation5], 0
    // Predicated region
    $region2: #{article_classifier_head.1} parent=1 // pred_check
      _
    $region3: #{article_classifier_head.1} parent=1 // pred_check_branch
      %15 = sbr.rel (0) target = $region5
    $region4: #{article_classifier_head.1} parent=1 // pred_region
      // Predicated region
      $region6: #{article_classifier_head.1} parent=4 // pred_check
        _
      $region7: #{article_classifier_head.1} parent=4 // pred_check_branch
        %17 = sbr.rel (0) target = $region9
      $region8: #{article_classifier_head.1} parent=4 // pred_region
        // Predicated region
        $region10: #{article_classifier_head.1} parent=8 // pred_check
          _
        $region11: #{article_classifier_head.1} parent=8 // pred_check_branch
          %19 = sbr.rel (0) target = $region13
        $region12: #{article_classifier_head.1} parent=8 // pred_region
          %s20 = scalar_lea.vmem %s0, 8
          %s21 = scalar_lea.vmem [#allocation2], 8
          loop: start=0, step=1, limit=1
          $region14: #{article_classifier_head.1} parent=12 // loop_pre_header
            _
          $region15: #{article_classifier_head.1} parent=12 // loop_header
            %s23 = sphi 0, %s27
            %p24 = scmp.ge.s32.totalorder %s23, 1
            %s28 = sphi %s0, %s0
            %s29 = sphi [#allocation2], [#allocation2]
          $region16: #{article_classifier_head.1} parent=12 // loop_header_branch
            %26 = sbr.rel (%p24) target = $region20
          $region17: #{article_classifier_head.1} parent=12 // loop_body
            %v30 = vld [vmem:[%s28] sm:$0xff]
            %31 = vst [vmem:[%s29] sm:$0xff] %v30
          $region18: #{article_classifier_head.1} parent=12 // loop_footer
            %s27 = sadd.s32 1, %s23
          $region19: #{article_classifier_head.1} parent=12 // loop_footer_branch
            %22 = sbr.rel target = $region15
          $region20: #{article_classifier_head.1} parent=12 // loop_exit
            _
          loop: start=0, step=1, limit=1
          $region21: #{article_classifier_head.1} parent=12 // loop_pre_header
            _
          $region22: #{article_classifier_head.1} parent=12 // loop_header
            %s34 = sphi 0, %s38
            %p35 = scmp.ge.s32.totalorder %s34, 1
            %s39 = sphi %s20, %s20
            %s40 = sphi %s21, %s21
          $region23: #{article_classifier_head.1} parent=12 // loop_header_branch
            %37 = sbr.rel (%p35) target = $region27
          $region24: #{article_classifier_head.1} parent=12 // loop_body
            %v41 = vld [vmem:[%s39] sm:$0xf]
            %42 = vst [vmem:[%s40] sm:$0xf] %v41
          $region25: #{article_classifier_head.1} parent=12 // loop_footer
            %s38 = sadd.s32 1, %s34
          $region26: #{article_classifier_head.1} parent=12 // loop_footer_branch
            %33 = sbr.rel target = $region22
          $region27: #{article_classifier_head.1} parent=12 // loop_exit
            _
        $region13: #{article_classifier_head.1} parent=8 // pred_fallthru
          _
      $region9: #{article_classifier_head.1} parent=4 // pred_fallthru
        _
      %43 = vnop
    $region5: #{article_classifier_head.1} parent=1 // pred_fallthru
      _
    // Predicated region
    $region28: #{article_classifier_head.1} parent=1 // pred_check
      _
    $region29: #{article_classifier_head.1} parent=1 // pred_check_branch
      %45 = sbr.rel (0) target = $region31
    $region30: #{article_classifier_head.1} parent=1 // pred_region
      %s47 = ssub.s32 36864, 36864
      %48 = vsyncadd [#allocation4], %s47
      %s49 = sshll.u32 [#allocation3], 4
      %s50 = int_to_ptr.vmem [resolvable:$true] %s49
      %55 = dma.hbm_to_vmem [thread:$0]  %s1, 36864, %s50, [#allocation4], 384, 384, 24
    $region31: #{article_classifier_head.1} parent=1 // pred_fallthru
      _
    // Predicated region
    $region32: #{article_classifier_head.1} parent=1 // pred_check
      _
    $region33: #{article_classifier_head.1} parent=1 // pred_check_branch
      %57 = sbr.rel (0) target = $region35
    $region34: #{article_classifier_head.1} parent=1 // pred_region
      %s59 = ssub.s32 96, 96
      %60 = vsyncadd [#allocation7], %s59
      %s62 = sshll.u32 [#allocation6], 4
      %s63 = int_to_ptr.vmem [resolvable:$true] %s62
      %65 = dma.hbm_to_vmem [thread:$0]  %s2, 96, %s63, [#allocation7]
    $region35: #{article_classifier_head.1} parent=1 // pred_fallthru
      _
    // Predicated region
    $region36: #{article_classifier_head.1} parent=1 // pred_check
      _
    $region37: #{article_classifier_head.1} parent=1 // pred_check_branch
      %67 = sbr.rel (0) target = $region39
    $region38: #{article_classifier_head.1} parent=1 // pred_region
      %s69 = ssub.s32 6144, 6144
      %70 = vsyncadd [#allocation7], %s69
      %s71 = sshll.u32 [#allocation8], 4
      %s72 = int_to_ptr.vmem [resolvable:$true] %s71
      %77 = dma.hbm_to_vmem [thread:$0]  %s3, 6144, %s72, [#allocation7], 64, 64, 4
    $region39: #{article_classifier_head.1} parent=1 // pred_fallthru
      _
    // Predicated region
    $region40: #{article_classifier_head.1} parent=1 // pred_check
      _
    $region41: #{article_classifier_head.1} parent=1 // pred_check_branch
      %79 = sbr.rel (0) target = $region43
    $region42: #{article_classifier_head.1} parent=1 // pred_region
      %s81 = ssub.s32 16, 16
      %82 = vsyncadd [#allocation10], %s81
      %s84 = sshll.u32 [#allocation9], 4
      %s85 = int_to_ptr.vmem [resolvable:$true] %s84
      %87 = dma.hbm_to_vmem [thread:$0]  %s4, 16, %s85, [#allocation10]
    $region43: #{article_classifier_head.1} parent=1 // pred_fallthru
      _
    // Predicated region
    $region44: #{article_classifier_head.1} parent=1 // pred_check
      _
    $region45: #{article_classifier_head.1} parent=1 // pred_check_branch
      %89 = sbr.rel (0) target = $region47
    $region46: #{article_classifier_head.1} parent=1 // pred_region
      _
    $region47: #{article_classifier_head.1} parent=1 // pred_fallthru
      _
    // Predicated region
    $region48: #{article_classifier_head.1} parent=1 // pred_check
      _
    $region49: #{article_classifier_head.1} parent=1 // pred_check_branch
      %91 = sbr.rel (0) target = $region51
    $region50: #{article_classifier_head.1} parent=1 // pred_region
      %92 = dma.done [#allocation4], 36864
    $region51: #{article_classifier_head.1} parent=1 // pred_fallthru
      _
    // Predicated region
    $region52: #{article_classifier_head.1} parent=1 // pred_check
      _
    $region53: #{article_classifier_head.1} parent=1 // pred_check_branch
      %94 = sbr.rel (0) target = $region55
    $region54: #{article_classifier_head.1} parent=1 // pred_region
      %95 = dma.done [#allocation7], 96
    $region55: #{article_classifier_head.1} parent=1 // pred_fallthru
      _
    // Predicated region
    $region56: #{article_classifier_head.1} parent=1 // pred_check
      _
    $region57: #{article_classifier_head.1} parent=1 // pred_check_branch
      %97 = sbr.rel (0) target = $region59
    $region58: #{article_classifier_head.1} parent=1 // pred_region
      %98 = dma.done [#allocation7], 6144
    $region59: #{article_classifier_head.1} parent=1 // pred_fallthru
      _
    // Predicated region
    $region60: #{article_classifier_head.1} parent=1 // pred_check
      _
    $region61: #{article_classifier_head.1} parent=1 // pred_check_branch
      %100 = sbr.rel (0) target = $region63
    $region62: #{article_classifier_head.1} parent=1 // pred_region
      %101 = dma.done [#allocation10], 16
    $region63: #{article_classifier_head.1} parent=1 // pred_fallthru
      _
    %v103 = vld [vmem:[#allocation2] sm:$0xff]
    %v104 = vld [vmem:[#allocation2 + $0x8] sm:$0xf]
    %v105 = vld [vmem:[#allocation2 + $0xc] sm:$0xff]
    %v106 = vld [vmem:[#allocation2 + $0x14] sm:$0xf]
    %v107 = vld [vmem:[#allocation2 + $0x18] sm:$0xff]
    %v108 = vld [vmem:[#allocation2 + $0x20] sm:$0xf]
    %v109 = vld [vmem:[#allocation2 + $0x24] sm:$0xff]
    %v110 = vld [vmem:[#allocation2 + $0x2c] sm:$0xf]
    %v119 = vcombine.low %v103, %v105
    %v120 = vcombine.high %v103, %v105
    %v121 = vcombine.low %v107, %v109
    %v122 = vcombine.high %v107, %v109
    %v124 = vunpack.c.l.s4 1983009808
    %v125 = vunpack.c.0.s8 %v124
    %v126 = vlaneseq
    %v127 = vshrl.u32 %v126, 7
    %v128 = vsub.s32 %v125, %v127
    %v129 = vrot.slane %v119, %v128
    %v131 = vunpack.c.l.s4 1983009808
    %v132 = vunpack.c.0.s8 %v131
    %v133 = vlaneseq
    %v134 = vshrl.u32 %v133, 7
    %v135 = vsub.s32 %v132, %v134
    %v136 = vrot.slane %v120, %v135
    %v138 = vunpack.c.l.s4 1983009808
    %v139 = vunpack.c.0.s8 %v138
    %v140 = vlaneseq
    %v141 = vshrl.u32 %v140, 7
    %v142 = vsub.s32 %v139, %v141
    %v143 = vrot.slane %v121, %v142
    %v145 = vunpack.c.l.s4 1983009808
    %v146 = vunpack.c.0.s8 %v145
    %v147 = vlaneseq
    %v148 = vshrl.u32 %v147, 7
    %v149 = vsub.s32 %v146, %v148
    %v150 = vrot.slane %v122, %v149
    %v151 = vcombine.low %v129, %v143
    %v152 = vcombine.high %v129, %v143
    %v153 = vcombine.low %v136, %v150
    %v154 = vcombine.high %v136, %v150
    %v155 = vcombine.low %v104, %v106
    %v156 = vcombine.low %v108, %v110
    %v158 = vunpack.c.l.s4 1983009808
    %v159 = vunpack.c.0.s8 %v158
    %v160 = vlaneseq
    %v161 = vshrl.u32 %v160, 7
    %v162 = vsub.s32 %v159, %v161
    %v163 = vrot.slane %v155, %v162
    %v165 = vunpack.c.l.s4 1983009808
    %v166 = vunpack.c.0.s8 %v165
    %v167 = vlaneseq
    %v168 = vshrl.u32 %v167, 7
    %v169 = vsub.s32 %v166, %v168
    %v170 = vrot.slane %v156, %v169
    %v171 = vcombine.low %v163, %v170
    %v172 = vcombine.high %v163, %v170
    %v179 = vpack.c.bf16 %v151, %v151
    %v180 = vpack.c.bf16 %v152, %v152
    %v181 = vpack.c.bf16 %v153, %v153
    %v182 = vpack.c.bf16 %v154, %v154
    %v183 = vpack.c.bf16 %v171, %v171
    %v184 = vpack.c.bf16 %v172, %v172
    %v185 = vld [vmem:[#allocation3] sm:$0xff]
    %v186 = vld [vmem:[#allocation3 + $0x8] sm:$0xff]
    %v187 = vld [vmem:[#allocation3 + $0x10] sm:$0xff]
    %v188 = vld [vmem:[#allocation3 + $0x18] sm:$0xff]
    %v189 = vld [vmem:[#allocation3 + $0x20] sm:$0xff]
    %v190 = vld [vmem:[#allocation3 + $0x28] sm:$0xff]
    %v191 = vld [vmem:[#allocation3 + $0x30] sm:$0xff]
    %v192 = vld [vmem:[#allocation3 + $0x38] sm:$0xff]
    %v193 = vld [vmem:[#allocation3 + $0x40] sm:$0xff]
    %v194 = vld [vmem:[#allocation3 + $0x48] sm:$0xff]
    %v195 = vld [vmem:[#allocation3 + $0x50] sm:$0xff]
    %v196 = vld [vmem:[#allocation3 + $0x58] sm:$0xff]
    %v197 = vld [vmem:[#allocation3 + $0x60] sm:$0xff]
    %v198 = vld [vmem:[#allocation3 + $0x68] sm:$0xff]
    %v199 = vld [vmem:[#allocation3 + $0x70] sm:$0xff]
    %v200 = vld [vmem:[#allocation3 + $0x78] sm:$0xff]
    %v201 = vld [vmem:[#allocation3 + $0x80] sm:$0xff]
    %v202 = vld [vmem:[#allocation3 + $0x88] sm:$0xff]
    %v203 = vld [vmem:[#allocation3 + $0x90] sm:$0xff]
    %v204 = vld [vmem:[#allocation3 + $0x98] sm:$0xff]
    %v205 = vld [vmem:[#allocation3 + $0xa0] sm:$0xff]
    %v206 = vld [vmem:[#allocation3 + $0xa8] sm:$0xff]
    %v207 = vld [vmem:[#allocation3 + $0xb0] sm:$0xff]
    %v208 = vld [vmem:[#allocation3 + $0xb8] sm:$0xff]
    %v209 = vld [vmem:[#allocation3 + $0xc0] sm:$0xff]
    %v210 = vld [vmem:[#allocation3 + $0xc8] sm:$0xff]
    %v211 = vld [vmem:[#allocation3 + $0xd0] sm:$0xff]
    %v212 = vld [vmem:[#allocation3 + $0xd8] sm:$0xff]
    %v213 = vld [vmem:[#allocation3 + $0xe0] sm:$0xff]
    %v214 = vld [vmem:[#allocation3 + $0xe8] sm:$0xff]
    %v215 = vld [vmem:[#allocation3 + $0xf0] sm:$0xff]
    %v216 = vld [vmem:[#allocation3 + $0xf8] sm:$0xff]
    %v217 = vld [vmem:[#allocation3 + $0x100] sm:$0xff]
    %v218 = vld [vmem:[#allocation3 + $0x108] sm:$0xff]
    %v219 = vld [vmem:[#allocation3 + $0x110] sm:$0xff]
    %v220 = vld [vmem:[#allocation3 + $0x118] sm:$0xff]
    %v221 = vld [vmem:[#allocation3 + $0x120] sm:$0xff]
    %v222 = vld [vmem:[#allocation3 + $0x128] sm:$0xff]
    %v223 = vld [vmem:[#allocation3 + $0x130] sm:$0xff]
    %v224 = vld [vmem:[#allocation3 + $0x138] sm:$0xff]
    %v225 = vld [vmem:[#allocation3 + $0x140] sm:$0xff]
    %v226 = vld [vmem:[#allocation3 + $0x148] sm:$0xff]
    %v227 = vld [vmem:[#allocation3 + $0x150] sm:$0xff]
    %v228 = vld [vmem:[#allocation3 + $0x158] sm:$0xff]
    %v229 = vld [vmem:[#allocation3 + $0x160] sm:$0xff]
    %v230 = vld [vmem:[#allocation3 + $0x168] sm:$0xff]
    %v231 = vld [vmem:[#allocation3 + $0x170] sm:$0xff]
    %v232 = vld [vmem:[#allocation3 + $0x178] sm:$0xff]
    %v233 = vld [vmem:[#allocation3 + $0x180] sm:$0xff]
    %v234 = vld [vmem:[#allocation3 + $0x188] sm:$0xff]
    %v235 = vld [vmem:[#allocation3 + $0x190] sm:$0xff]
    %v236 = vld [vmem:[#allocation3 + $0x198] sm:$0xff]
    %v237 = vld [vmem:[#allocation3 + $0x1a0] sm:$0xff]
    %v238 = vld [vmem:[#allocation3 + $0x1a8] sm:$0xff]
    %v239 = vld [vmem:[#allocation3 + $0x1b0] sm:$0xff]
    %v240 = vld [vmem:[#allocation3 + $0x1b8] sm:$0xff]
    %v241 = vld [vmem:[#allocation3 + $0x1c0] sm:$0xff]
    %v242 = vld [vmem:[#allocation3 + $0x1c8] sm:$0xff]
    %v243 = vld [vmem:[#allocation3 + $0x1d0] sm:$0xff]
    %v244 = vld [vmem:[#allocation3 + $0x1d8] sm:$0xff]
    %v245 = vld [vmem:[#allocation3 + $0x1e0] sm:$0xff]
    %v246 = vld [vmem:[#allocation3 + $0x1e8] sm:$0xff]
    %v247 = vld [vmem:[#allocation3 + $0x1f0] sm:$0xff]
    %v248 = vld [vmem:[#allocation3 + $0x1f8] sm:$0xff]
    %v249 = vld [vmem:[#allocation3 + $0x200] sm:$0xff]
    %v250 = vld [vmem:[#allocation3 + $0x208] sm:$0xff]
    %v251 = vld [vmem:[#allocation3 + $0x210] sm:$0xff]
    %v252 = vld [vmem:[#allocation3 + $0x218] sm:$0xff]
    %v253 = vld [vmem:[#allocation3 + $0x220] sm:$0xff]
    %v254 = vld [vmem:[#allocation3 + $0x228] sm:$0xff]
    %v255 = vld [vmem:[#allocation3 + $0x230] sm:$0xff]
    %v256 = vld [vmem:[#allocation3 + $0x238] sm:$0xff]
    %v257 = vld [vmem:[#allocation3 + $0x240] sm:$0xff]
    %v258 = vld [vmem:[#allocation3 + $0x248] sm:$0xff]
    %v259 = vld [vmem:[#allocation3 + $0x250] sm:$0xff]
    %v260 = vld [vmem:[#allocation3 + $0x258] sm:$0xff]
    %v261 = vld [vmem:[#allocation3 + $0x260] sm:$0xff]
    %v262 = vld [vmem:[#allocation3 + $0x268] sm:$0xff]
    %v263 = vld [vmem:[#allocation3 + $0x270] sm:$0xff]
    %v264 = vld [vmem:[#allocation3 + $0x278] sm:$0xff]
    %v265 = vld [vmem:[#allocation3 + $0x280] sm:$0xff]
    %v266 = vld [vmem:[#allocation3 + $0x288] sm:$0xff]
    %v267 = vld [vmem:[#allocation3 + $0x290] sm:$0xff]
    %v268 = vld [vmem:[#allocation3 + $0x298] sm:$0xff]
    %v269 = vld [vmem:[#allocation3 + $0x2a0] sm:$0xff]
    %v270 = vld [vmem:[#allocation3 + $0x2a8] sm:$0xff]
    %v271 = vld [vmem:[#allocation3 + $0x2b0] sm:$0xff]
    %v272 = vld [vmem:[#allocation3 + $0x2b8] sm:$0xff]
    %v273 = vld [vmem:[#allocation3 + $0x2c0] sm:$0xff]
    %v274 = vld [vmem:[#allocation3 + $0x2c8] sm:$0xff]
    %v275 = vld [vmem:[#allocation3 + $0x2d0] sm:$0xff]
    %v276 = vld [vmem:[#allocation3 + $0x2d8] sm:$0xff]
    %v277 = vld [vmem:[#allocation3 + $0x2e0] sm:$0xff]
    %v278 = vld [vmem:[#allocation3 + $0x2e8] sm:$0xff]
    %v279 = vld [vmem:[#allocation3 + $0x2f0] sm:$0xff]
    %v280 = vld [vmem:[#allocation3 + $0x2f8] sm:$0xff]
    %v281 = vld [vmem:[#allocation3 + $0x300] sm:$0xff]
    %v282 = vld [vmem:[#allocation3 + $0x308] sm:$0xff]
    %v283 = vld [vmem:[#allocation3 + $0x310] sm:$0xff]
    %v284 = vld [vmem:[#allocation3 + $0x318] sm:$0xff]
    %v285 = vld [vmem:[#allocation3 + $0x320] sm:$0xff]
    %v286 = vld [vmem:[#allocation3 + $0x328] sm:$0xff]
    %v287 = vld [vmem:[#allocation3 + $0x330] sm:$0xff]
    %v288 = vld [vmem:[#allocation3 + $0x338] sm:$0xff]
    %v289 = vld [vmem:[#allocation3 + $0x340] sm:$0xff]
    %v290 = vld [vmem:[#allocation3 + $0x348] sm:$0xff]
    %v291 = vld [vmem:[#allocation3 + $0x350] sm:$0xff]
    %v292 = vld [vmem:[#allocation3 + $0x358] sm:$0xff]
    %v293 = vld [vmem:[#allocation3 + $0x360] sm:$0xff]
    %v294 = vld [vmem:[#allocation3 + $0x368] sm:$0xff]
    %v295 = vld [vmem:[#allocation3 + $0x370] sm:$0xff]
    %v296 = vld [vmem:[#allocation3 + $0x378] sm:$0xff]
    %v297 = vld [vmem:[#allocation3 + $0x380] sm:$0xff]
    %v298 = vld [vmem:[#allocation3 + $0x388] sm:$0xff]
    %v299 = vld [vmem:[#allocation3 + $0x390] sm:$0xff]
    %v300 = vld [vmem:[#allocation3 + $0x398] sm:$0xff]
    %v301 = vld [vmem:[#allocation3 + $0x3a0] sm:$0xff]
    %v302 = vld [vmem:[#allocation3 + $0x3a8] sm:$0xff]
    %v303 = vld [vmem:[#allocation3 + $0x3b0] sm:$0xff]
    %v304 = vld [vmem:[#allocation3 + $0x3b8] sm:$0xff]
    %v305 = vld [vmem:[#allocation3 + $0x3c0] sm:$0xff]
    %v306 = vld [vmem:[#allocation3 + $0x3c8] sm:$0xff]
    %v307 = vld [vmem:[#allocation3 + $0x3d0] sm:$0xff]
    %v308 = vld [vmem:[#allocation3 + $0x3d8] sm:$0xff]
    %v309 = vld [vmem:[#allocation3 + $0x3e0] sm:$0xff]
    %v310 = vld [vmem:[#allocation3 + $0x3e8] sm:$0xff]
    %v311 = vld [vmem:[#allocation3 + $0x3f0] sm:$0xff]
    %v312 = vld [vmem:[#allocation3 + $0x3f8] sm:$0xff]
    %v313 = vld [vmem:[#allocation3 + $0x400] sm:$0xff]
    %v314 = vld [vmem:[#allocation3 + $0x408] sm:$0xff]
    %v315 = vld [vmem:[#allocation3 + $0x410] sm:$0xff]
    %v316 = vld [vmem:[#allocation3 + $0x418] sm:$0xff]
    %v317 = vld [vmem:[#allocation3 + $0x420] sm:$0xff]
    %v318 = vld [vmem:[#allocation3 + $0x428] sm:$0xff]
    %v319 = vld [vmem:[#allocation3 + $0x430] sm:$0xff]
    %v320 = vld [vmem:[#allocation3 + $0x438] sm:$0xff]
    %v321 = vld [vmem:[#allocation3 + $0x440] sm:$0xff]
    %v322 = vld [vmem:[#allocation3 + $0x448] sm:$0xff]
    %v323 = vld [vmem:[#allocation3 + $0x450] sm:$0xff]
    %v324 = vld [vmem:[#allocation3 + $0x458] sm:$0xff]
    %v325 = vld [vmem:[#allocation3 + $0x460] sm:$0xff]
    %v326 = vld [vmem:[#allocation3 + $0x468] sm:$0xff]
    %v327 = vld [vmem:[#allocation3 + $0x470] sm:$0xff]
    %v328 = vld [vmem:[#allocation3 + $0x478] sm:$0xff]
    %v329 = vld [vmem:[#allocation3 + $0x480] sm:$0xff]
    %v330 = vld [vmem:[#allocation3 + $0x488] sm:$0xff]
    %v331 = vld [vmem:[#allocation3 + $0x490] sm:$0xff]
    %v332 = vld [vmem:[#allocation3 + $0x498] sm:$0xff]
    %v333 = vld [vmem:[#allocation3 + $0x4a0] sm:$0xff]
    %v334 = vld [vmem:[#allocation3 + $0x4a8] sm:$0xff]
    %v335 = vld [vmem:[#allocation3 + $0x4b0] sm:$0xff]
    %v336 = vld [vmem:[#allocation3 + $0x4b8] sm:$0xff]
    %v337 = vld [vmem:[#allocation3 + $0x4c0] sm:$0xff]
    %v338 = vld [vmem:[#allocation3 + $0x4c8] sm:$0xff]
    %v339 = vld [vmem:[#allocation3 + $0x4d0] sm:$0xff]
    %v340 = vld [vmem:[#allocation3 + $0x4d8] sm:$0xff]
    %v341 = vld [vmem:[#allocation3 + $0x4e0] sm:$0xff]
    %v342 = vld [vmem:[#allocation3 + $0x4e8] sm:$0xff]
    %v343 = vld [vmem:[#allocation3 + $0x4f0] sm:$0xff]
    %v344 = vld [vmem:[#allocation3 + $0x4f8] sm:$0xff]
    %v345 = vld [vmem:[#allocation3 + $0x500] sm:$0xff]
    %v346 = vld [vmem:[#allocation3 + $0x508] sm:$0xff]
    %v347 = vld [vmem:[#allocation3 + $0x510] sm:$0xff]
    %v348 = vld [vmem:[#allocation3 + $0x518] sm:$0xff]
    %v349 = vld [vmem:[#allocation3 + $0x520] sm:$0xff]
    %v350 = vld [vmem:[#allocation3 + $0x528] sm:$0xff]
    %v351 = vld [vmem:[#allocation3 + $0x530] sm:$0xff]
    %v352 = vld [vmem:[#allocation3 + $0x538] sm:$0xff]
    %v353 = vld [vmem:[#allocation3 + $0x540] sm:$0xff]
    %v354 = vld [vmem:[#allocation3 + $0x548] sm:$0xff]
    %v355 = vld [vmem:[#allocation3 + $0x550] sm:$0xff]
    %v356 = vld [vmem:[#allocation3 + $0x558] sm:$0xff]
    %v357 = vld [vmem:[#allocation3 + $0x560] sm:$0xff]
    %v358 = vld [vmem:[#allocation3 + $0x568] sm:$0xff]
    %v359 = vld [vmem:[#allocation3 + $0x570] sm:$0xff]
    %v360 = vld [vmem:[#allocation3 + $0x578] sm:$0xff]
    %v361 = vld [vmem:[#allocation3 + $0x580] sm:$0xff]
    %v362 = vld [vmem:[#allocation3 + $0x588] sm:$0xff]
    %v363 = vld [vmem:[#allocation3 + $0x590] sm:$0xff]
    %v364 = vld [vmem:[#allocation3 + $0x598] sm:$0xff]
    %v365 = vld [vmem:[#allocation3 + $0x5a0] sm:$0xff]
    %v366 = vld [vmem:[#allocation3 + $0x5a8] sm:$0xff]
    %v367 = vld [vmem:[#allocation3 + $0x5b0] sm:$0xff]
    %v368 = vld [vmem:[#allocation3 + $0x5b8] sm:$0xff]
    %v369 = vld [vmem:[#allocation3 + $0x5c0] sm:$0xff]
    %v370 = vld [vmem:[#allocation3 + $0x5c8] sm:$0xff]
    %v371 = vld [vmem:[#allocation3 + $0x5d0] sm:$0xff]
    %v372 = vld [vmem:[#allocation3 + $0x5d8] sm:$0xff]
    %v373 = vld [vmem:[#allocation3 + $0x5e0] sm:$0xff]
    %v374 = vld [vmem:[#allocation3 + $0x5e8] sm:$0xff]
    %v375 = vld [vmem:[#allocation3 + $0x5f0] sm:$0xff]
    %v376 = vld [vmem:[#allocation3 + $0x5f8] sm:$0xff]
    %v377 = vld [vmem:[#allocation3 + $0x600] sm:$0xff]
    %v378 = vld [vmem:[#allocation3 + $0x608] sm:$0xff]
    %v379 = vld [vmem:[#allocation3 + $0x610] sm:$0xff]
    %v380 = vld [vmem:[#allocation3 + $0x618] sm:$0xff]
    %v381 = vld [vmem:[#allocation3 + $0x620] sm:$0xff]
    %v382 = vld [vmem:[#allocation3 + $0x628] sm:$0xff]
    %v383 = vld [vmem:[#allocation3 + $0x630] sm:$0xff]
    %v384 = vld [vmem:[#allocation3 + $0x638] sm:$0xff]
    %v385 = vld [vmem:[#allocation3 + $0x640] sm:$0xff]
    %v386 = vld [vmem:[#allocation3 + $0x648] sm:$0xff]
    %v387 = vld [vmem:[#allocation3 + $0x650] sm:$0xff]
    %v388 = vld [vmem:[#allocation3 + $0x658] sm:$0xff]
    %v389 = vld [vmem:[#allocation3 + $0x660] sm:$0xff]
    %v390 = vld [vmem:[#allocation3 + $0x668] sm:$0xff]
    %v391 = vld [vmem:[#allocation3 + $0x670] sm:$0xff]
    %v392 = vld [vmem:[#allocation3 + $0x678] sm:$0xff]
    %v393 = vld [vmem:[#allocation3 + $0x680] sm:$0xff]
    %v394 = vld [vmem:[#allocation3 + $0x688] sm:$0xff]
    %v395 = vld [vmem:[#allocation3 + $0x690] sm:$0xff]
    %v396 = vld [vmem:[#allocation3 + $0x698] sm:$0xff]
    %v397 = vld [vmem:[#allocation3 + $0x6a0] sm:$0xff]
    %v398 = vld [vmem:[#allocation3 + $0x6a8] sm:$0xff]
    %v399 = vld [vmem:[#allocation3 + $0x6b0] sm:$0xff]
    %v400 = vld [vmem:[#allocation3 + $0x6b8] sm:$0xff]
    %v401 = vld [vmem:[#allocation3 + $0x6c0] sm:$0xff]
    %v402 = vld [vmem:[#allocation3 + $0x6c8] sm:$0xff]
    %v403 = vld [vmem:[#allocation3 + $0x6d0] sm:$0xff]
    %v404 = vld [vmem:[#allocation3 + $0x6d8] sm:$0xff]
    %v405 = vld [vmem:[#allocation3 + $0x6e0] sm:$0xff]
    %v406 = vld [vmem:[#allocation3 + $0x6e8] sm:$0xff]
    %v407 = vld [vmem:[#allocation3 + $0x6f0] sm:$0xff]
    %v408 = vld [vmem:[#allocation3 + $0x6f8] sm:$0xff]
    %v409 = vld [vmem:[#allocation3 + $0x700] sm:$0xff]
    %v410 = vld [vmem:[#allocation3 + $0x708] sm:$0xff]
    %v411 = vld [vmem:[#allocation3 + $0x710] sm:$0xff]
    %v412 = vld [vmem:[#allocation3 + $0x718] sm:$0xff]
    %v413 = vld [vmem:[#allocation3 + $0x720] sm:$0xff]
    %v414 = vld [vmem:[#allocation3 + $0x728] sm:$0xff]
    %v415 = vld [vmem:[#allocation3 + $0x730] sm:$0xff]
    %v416 = vld [vmem:[#allocation3 + $0x738] sm:$0xff]
    %v417 = vld [vmem:[#allocation3 + $0x740] sm:$0xff]
    %v418 = vld [vmem:[#allocation3 + $0x748] sm:$0xff]
    %v419 = vld [vmem:[#allocation3 + $0x750] sm:$0xff]
    %v420 = vld [vmem:[#allocation3 + $0x758] sm:$0xff]
    %v421 = vld [vmem:[#allocation3 + $0x760] sm:$0xff]
    %v422 = vld [vmem:[#allocation3 + $0x768] sm:$0xff]
    %v423 = vld [vmem:[#allocation3 + $0x770] sm:$0xff]
    %v424 = vld [vmem:[#allocation3 + $0x778] sm:$0xff]
    %v425 = vld [vmem:[#allocation3 + $0x780] sm:$0xff]
    %v426 = vld [vmem:[#allocation3 + $0x788] sm:$0xff]
    %v427 = vld [vmem:[#allocation3 + $0x790] sm:$0xff]
    %v428 = vld [vmem:[#allocation3 + $0x798] sm:$0xff]
    %v429 = vld [vmem:[#allocation3 + $0x7a0] sm:$0xff]
    %v430 = vld [vmem:[#allocation3 + $0x7a8] sm:$0xff]
    %v431 = vld [vmem:[#allocation3 + $0x7b0] sm:$0xff]
    %v432 = vld [vmem:[#allocation3 + $0x7b8] sm:$0xff]
    %v433 = vld [vmem:[#allocation3 + $0x7c0] sm:$0xff]
    %v434 = vld [vmem:[#allocation3 + $0x7c8] sm:$0xff]
    %v435 = vld [vmem:[#allocation3 + $0x7d0] sm:$0xff]
    %v436 = vld [vmem:[#allocation3 + $0x7d8] sm:$0xff]
    %v437 = vld [vmem:[#allocation3 + $0x7e0] sm:$0xff]
    %v438 = vld [vmem:[#allocation3 + $0x7e8] sm:$0xff]
    %v439 = vld [vmem:[#allocation3 + $0x7f0] sm:$0xff]
    %v440 = vld [vmem:[#allocation3 + $0x7f8] sm:$0xff]
    %v441 = vld [vmem:[#allocation3 + $0x800] sm:$0xff]
    %v442 = vld [vmem:[#allocation3 + $0x808] sm:$0xff]
    %v443 = vld [vmem:[#allocation3 + $0x810] sm:$0xff]
    %v444 = vld [vmem:[#allocation3 + $0x818] sm:$0xff]
    %v445 = vld [vmem:[#allocation3 + $0x820] sm:$0xff]
    %v446 = vld [vmem:[#allocation3 + $0x828] sm:$0xff]
    %v447 = vld [vmem:[#allocation3 + $0x830] sm:$0xff]
    %v448 = vld [vmem:[#allocation3 + $0x838] sm:$0xff]
    %v449 = vld [vmem:[#allocation3 + $0x840] sm:$0xff]
    %v450 = vld [vmem:[#allocation3 + $0x848] sm:$0xff]
    %v451 = vld [vmem:[#allocation3 + $0x850] sm:$0xff]
    %v452 = vld [vmem:[#allocation3 + $0x858] sm:$0xff]
    %v453 = vld [vmem:[#allocation3 + $0x860] sm:$0xff]
    %v454 = vld [vmem:[#allocation3 + $0x868] sm:$0xff]
    %v455 = vld [vmem:[#allocation3 + $0x870] sm:$0xff]
    %v456 = vld [vmem:[#allocation3 + $0x878] sm:$0xff]
    %v457 = vld [vmem:[#allocation3 + $0x880] sm:$0xff]
    %v458 = vld [vmem:[#allocation3 + $0x888] sm:$0xff]
    %v459 = vld [vmem:[#allocation3 + $0x890] sm:$0xff]
    %v460 = vld [vmem:[#allocation3 + $0x898] sm:$0xff]
    %v461 = vld [vmem:[#allocation3 + $0x8a0] sm:$0xff]
    %v462 = vld [vmem:[#allocation3 + $0x8a8] sm:$0xff]
    %v463 = vld [vmem:[#allocation3 + $0x8b0] sm:$0xff]
    %v464 = vld [vmem:[#allocation3 + $0x8b8] sm:$0xff]
    %v465 = vld [vmem:[#allocation3 + $0x8c0] sm:$0xff]
    %v466 = vld [vmem:[#allocation3 + $0x8c8] sm:$0xff]
    %v467 = vld [vmem:[#allocation3 + $0x8d0] sm:$0xff]
    %v468 = vld [vmem:[#allocation3 + $0x8d8] sm:$0xff]
    %v469 = vld [vmem:[#allocation3 + $0x8e0] sm:$0xff]
    %v470 = vld [vmem:[#allocation3 + $0x8e8] sm:$0xff]
    %v471 = vld [vmem:[#allocation3 + $0x8f0] sm:$0xff]
    %v472 = vld [vmem:[#allocation3 + $0x8f8] sm:$0xff]
    %v473 = vld [vmem:[#allocation6] sm:$0x3f]
    %v475 = vlaneseq
    %v476 = vshrl.u32 %v475, 7
    %v477 = vsub.s32 0, %v476
    %v478 = vrot.slane %v473, %v477
    %v479 = vlaneseq
    %v480 = vshrl.u32 %v479, 7
    %v481 = vsub.s32 1, %v480
    %v482 = vrot.slane %v473, %v481
    %v483 = vlaneseq
    %v484 = vshrl.u32 %v483, 7
    %v485 = vsub.s32 2, %v484
    %v486 = vrot.slane %v473, %v485
    %v487 = vlaneseq
    %v488 = vshrl.u32 %v487, 7
    %v489 = vsub.s32 3, %v488
    %v490 = vrot.slane %v473, %v489
    %v491 = vlaneseq
    %v492 = vshrl.u32 %v491, 7
    %v493 = vsub.s32 4, %v492
    %v494 = vrot.slane %v473, %v493
    %v495 = vlaneseq
    %v496 = vshrl.u32 %v495, 7
    %v497 = vsub.s32 5, %v496
    %v498 = vrot.slane %v473, %v497
    %v793 = vunpack.c.l.b16 %v185
    %v794 = vunpack.c.h.b16 %v185
    %v795 = vunpack.c.l.b16 %v186
    %v796 = vunpack.c.h.b16 %v186
    %v797 = vunpack.c.l.b16 %v187
    %v798 = vunpack.c.h.b16 %v187
    %v799 = vunpack.c.l.b16 %v188
    %v800 = vunpack.c.h.b16 %v188
    %v801 = vunpack.c.l.b16 %v189
    %v802 = vunpack.c.h.b16 %v189
    %v803 = vunpack.c.l.b16 %v190
    %v804 = vunpack.c.h.b16 %v190
    %v805 = vunpack.c.l.b16 %v191
    %v806 = vunpack.c.h.b16 %v191
    %v807 = vunpack.c.l.b16 %v192
    %v808 = vunpack.c.h.b16 %v192
    %v809 = vunpack.c.l.b16 %v193
    %v810 = vunpack.c.h.b16 %v193
    %v811 = vunpack.c.l.b16 %v194
    %v812 = vunpack.c.h.b16 %v194
    %v813 = vunpack.c.l.b16 %v195
    %v814 = vunpack.c.h.b16 %v195
    %v815 = vunpack.c.l.b16 %v196
    %v816 = vunpack.c.h.b16 %v196
    %v817 = vunpack.c.l.b16 %v197
    %v818 = vunpack.c.h.b16 %v197
    %v819 = vunpack.c.l.b16 %v198
    %v820 = vunpack.c.h.b16 %v198
    %v821 = vunpack.c.l.b16 %v199
    %v822 = vunpack.c.h.b16 %v199
    %v823 = vunpack.c.l.b16 %v200
    %v824 = vunpack.c.h.b16 %v200
    %v825 = vunpack.c.l.b16 %v201
    %v826 = vunpack.c.h.b16 %v201
    %v827 = vunpack.c.l.b16 %v202
    %v828 = vunpack.c.h.b16 %v202
    %v829 = vunpack.c.l.b16 %v203
    %v830 = vunpack.c.h.b16 %v203
    %v831 = vunpack.c.l.b16 %v204
    %v832 = vunpack.c.h.b16 %v204
    %v833 = vunpack.c.l.b16 %v205
    %v834 = vunpack.c.h.b16 %v205
    %v835 = vunpack.c.l.b16 %v206
    %v836 = vunpack.c.h.b16 %v206
    %v837 = vunpack.c.l.b16 %v207
    %v838 = vunpack.c.h.b16 %v207
    %v839 = vunpack.c.l.b16 %v208
    %v840 = vunpack.c.h.b16 %v208
    %v841 = vunpack.c.l.b16 %v209
    %v842 = vunpack.c.h.b16 %v209
    %v843 = vunpack.c.l.b16 %v210
    %v844 = vunpack.c.h.b16 %v210
    %v845 = vunpack.c.l.b16 %v211
    %v846 = vunpack.c.h.b16 %v211
    %v847 = vunpack.c.l.b16 %v212
    %v848 = vunpack.c.h.b16 %v212
    %v849 = vunpack.c.l.b16 %v213
    %v850 = vunpack.c.h.b16 %v213
    %v851 = vunpack.c.l.b16 %v214
    %v852 = vunpack.c.h.b16 %v214
    %v853 = vunpack.c.l.b16 %v215
    %v854 = vunpack.c.h.b16 %v215
    %v855 = vunpack.c.l.b16 %v216
    %v856 = vunpack.c.h.b16 %v216
    %v857 = vunpack.c.l.b16 %v217
    %v858 = vunpack.c.h.b16 %v217
    %v859 = vunpack.c.l.b16 %v218
    %v860 = vunpack.c.h.b16 %v218
    %v861 = vunpack.c.l.b16 %v219
    %v862 = vunpack.c.h.b16 %v219
    %v863 = vunpack.c.l.b16 %v220
    %v864 = vunpack.c.h.b16 %v220
    %v865 = vunpack.c.l.b16 %v221
    %v866 = vunpack.c.h.b16 %v221
    %v867 = vunpack.c.l.b16 %v222
    %v868 = vunpack.c.h.b16 %v222
    %v869 = vunpack.c.l.b16 %v223
    %v870 = vunpack.c.h.b16 %v223
    %v871 = vunpack.c.l.b16 %v224
    %v872 = vunpack.c.h.b16 %v224
    %v873 = vunpack.c.l.b16 %v225
    %v874 = vunpack.c.h.b16 %v225
    %v875 = vunpack.c.l.b16 %v226
    %v876 = vunpack.c.h.b16 %v226
    %v877 = vunpack.c.l.b16 %v227
    %v878 = vunpack.c.h.b16 %v227
    %v879 = vunpack.c.l.b16 %v228
    %v880 = vunpack.c.h.b16 %v228
    %v881 = vunpack.c.l.b16 %v229
    %v882 = vunpack.c.h.b16 %v229
    %v883 = vunpack.c.l.b16 %v230
    %v884 = vunpack.c.h.b16 %v230
    %v885 = vunpack.c.l.b16 %v231
    %v886 = vunpack.c.h.b16 %v231
    %v887 = vunpack.c.l.b16 %v232
    %v888 = vunpack.c.h.b16 %v232
    %v889 = vunpack.c.l.b16 %v233
    %v890 = vunpack.c.h.b16 %v233
    %v891 = vunpack.c.l.b16 %v234
    %v892 = vunpack.c.h.b16 %v234
    %v893 = vunpack.c.l.b16 %v235
    %v894 = vunpack.c.h.b16 %v235
    %v895 = vunpack.c.l.b16 %v236
    %v896 = vunpack.c.h.b16 %v236
    %v897 = vunpack.c.l.b16 %v237
    %v898 = vunpack.c.h.b16 %v237
    %v899 = vunpack.c.l.b16 %v238
    %v900 = vunpack.c.h.b16 %v238
    %v901 = vunpack.c.l.b16 %v239
    %v902 = vunpack.c.h.b16 %v239
    %v903 = vunpack.c.l.b16 %v240
    %v904 = vunpack.c.h.b16 %v240
    %v905 = vunpack.c.l.b16 %v241
    %v906 = vunpack.c.h.b16 %v241
    %v907 = vunpack.c.l.b16 %v242
    %v908 = vunpack.c.h.b16 %v242
    %v909 = vunpack.c.l.b16 %v243
    %v910 = vunpack.c.h.b16 %v243
    %v911 = vunpack.c.l.b16 %v244
    %v912 = vunpack.c.h.b16 %v244
    %v913 = vunpack.c.l.b16 %v245
    %v914 = vunpack.c.h.b16 %v245
    %v915 = vunpack.c.l.b16 %v246
    %v916 = vunpack.c.h.b16 %v246
    %v917 = vunpack.c.l.b16 %v247
    %v918 = vunpack.c.h.b16 %v247
    %v919 = vunpack.c.l.b16 %v248
    %v920 = vunpack.c.h.b16 %v248
    %v921 = vunpack.c.l.b16 %v249
    %v922 = vunpack.c.h.b16 %v249
    %v923 = vunpack.c.l.b16 %v250
    %v924 = vunpack.c.h.b16 %v250
    %v925 = vunpack.c.l.b16 %v251
    %v926 = vunpack.c.h.b16 %v251
    %v927 = vunpack.c.l.b16 %v252
    %v928 = vunpack.c.h.b16 %v252
    %v929 = vunpack.c.l.b16 %v253
    %v930 = vunpack.c.h.b16 %v253
    %v931 = vunpack.c.l.b16 %v254
    %v932 = vunpack.c.h.b16 %v254
    %v933 = vunpack.c.l.b16 %v255
    %v934 = vunpack.c.h.b16 %v255
    %v935 = vunpack.c.l.b16 %v256
    %v936 = vunpack.c.h.b16 %v256
    %v937 = vunpack.c.l.b16 %v257
    %v938 = vunpack.c.h.b16 %v257
    %v939 = vunpack.c.l.b16 %v258
    %v940 = vunpack.c.h.b16 %v258
    %v941 = vunpack.c.l.b16 %v259
    %v942 = vunpack.c.h.b16 %v259
    %v943 = vunpack.c.l.b16 %v260
    %v944 = vunpack.c.h.b16 %v260
    %v945 = vunpack.c.l.b16 %v261
    %v946 = vunpack.c.h.b16 %v261
    %v947 = vunpack.c.l.b16 %v262
    %v948 = vunpack.c.h.b16 %v262
    %v949 = vunpack.c.l.b16 %v263
    %v950 = vunpack.c.h.b16 %v263
    %v951 = vunpack.c.l.b16 %v264
    %v952 = vunpack.c.h.b16 %v264
    %v953 = vunpack.c.l.b16 %v265
    %v954 = vunpack.c.h.b16 %v265
    %v955 = vunpack.c.l.b16 %v266
    %v956 = vunpack.c.h.b16 %v266
    %v957 = vunpack.c.l.b16 %v267
    %v958 = vunpack.c.h.b16 %v267
    %v959 = vunpack.c.l.b16 %v268
    %v960 = vunpack.c.h.b16 %v268
    %v961 = vunpack.c.l.b16 %v269
    %v962 = vunpack.c.h.b16 %v269
    %v963 = vunpack.c.l.b16 %v270
    %v964 = vunpack.c.h.b16 %v270
    %v965 = vunpack.c.l.b16 %v271
    %v966 = vunpack.c.h.b16 %v271
    %v967 = vunpack.c.l.b16 %v272
    %v968 = vunpack.c.h.b16 %v272
    %v969 = vunpack.c.l.b16 %v273
    %v970 = vunpack.c.h.b16 %v273
    %v971 = vunpack.c.l.b16 %v274
    %v972 = vunpack.c.h.b16 %v274
    %v973 = vunpack.c.l.b16 %v275
    %v974 = vunpack.c.h.b16 %v275
    %v975 = vunpack.c.l.b16 %v276
    %v976 = vunpack.c.h.b16 %v276
    %v977 = vunpack.c.l.b16 %v277
    %v978 = vunpack.c.h.b16 %v277
    %v979 = vunpack.c.l.b16 %v278
    %v980 = vunpack.c.h.b16 %v278
    %v981 = vunpack.c.l.b16 %v279
    %v982 = vunpack.c.h.b16 %v279
    %v983 = vunpack.c.l.b16 %v280
    %v984 = vunpack.c.h.b16 %v280
    %v985 = vunpack.c.l.b16 %v281
    %v986 = vunpack.c.h.b16 %v281
    %v987 = vunpack.c.l.b16 %v282
    %v988 = vunpack.c.h.b16 %v282
    %v989 = vunpack.c.l.b16 %v283
    %v990 = vunpack.c.h.b16 %v283
    %v991 = vunpack.c.l.b16 %v284
    %v992 = vunpack.c.h.b16 %v284
    %v993 = vunpack.c.l.b16 %v285
    %v994 = vunpack.c.h.b16 %v285
    %v995 = vunpack.c.l.b16 %v286
    %v996 = vunpack.c.h.b16 %v286
    %v997 = vunpack.c.l.b16 %v287
    %v998 = vunpack.c.h.b16 %v287
    %v999 = vunpack.c.l.b16 %v288
    %v1000 = vunpack.c.h.b16 %v288
    %v1001 = vunpack.c.l.b16 %v289
    %v1002 = vunpack.c.h.b16 %v289
    %v1003 = vunpack.c.l.b16 %v290
    %v1004 = vunpack.c.h.b16 %v290
    %v1005 = vunpack.c.l.b16 %v291
    %v1006 = vunpack.c.h.b16 %v291
    %v1007 = vunpack.c.l.b16 %v292
    %v1008 = vunpack.c.h.b16 %v292
    %v1009 = vunpack.c.l.b16 %v293
    %v1010 = vunpack.c.h.b16 %v293
    %v1011 = vunpack.c.l.b16 %v294
    %v1012 = vunpack.c.h.b16 %v294
    %v1013 = vunpack.c.l.b16 %v295
    %v1014 = vunpack.c.h.b16 %v295
    %v1015 = vunpack.c.l.b16 %v296
    %v1016 = vunpack.c.h.b16 %v296
    %v1017 = vunpack.c.l.b16 %v297
    %v1018 = vunpack.c.h.b16 %v297
    %v1019 = vunpack.c.l.b16 %v298
    %v1020 = vunpack.c.h.b16 %v298
    %v1021 = vunpack.c.l.b16 %v299
    %v1022 = vunpack.c.h.b16 %v299
    %v1023 = vunpack.c.l.b16 %v300
    %v1024 = vunpack.c.h.b16 %v300
    %v1025 = vunpack.c.l.b16 %v301
    %v1026 = vunpack.c.h.b16 %v301
    %v1027 = vunpack.c.l.b16 %v302
    %v1028 = vunpack.c.h.b16 %v302
    %v1029 = vunpack.c.l.b16 %v303
    %v1030 = vunpack.c.h.b16 %v303
    %v1031 = vunpack.c.l.b16 %v304
    %v1032 = vunpack.c.h.b16 %v304
    %v1033 = vunpack.c.l.b16 %v305
    %v1034 = vunpack.c.h.b16 %v305
    %v1035 = vunpack.c.l.b16 %v306
    %v1036 = vunpack.c.h.b16 %v306
    %v1037 = vunpack.c.l.b16 %v307
    %v1038 = vunpack.c.h.b16 %v307
    %v1039 = vunpack.c.l.b16 %v308
    %v1040 = vunpack.c.h.b16 %v308
    %v1041 = vunpack.c.l.b16 %v309
    %v1042 = vunpack.c.h.b16 %v309
    %v1043 = vunpack.c.l.b16 %v310
    %v1044 = vunpack.c.h.b16 %v310
    %v1045 = vunpack.c.l.b16 %v311
    %v1046 = vunpack.c.h.b16 %v311
    %v1047 = vunpack.c.l.b16 %v312
    %v1048 = vunpack.c.h.b16 %v312
    %v1049 = vunpack.c.l.b16 %v313
    %v1050 = vunpack.c.h.b16 %v313
    %v1051 = vunpack.c.l.b16 %v314
    %v1052 = vunpack.c.h.b16 %v314
    %v1053 = vunpack.c.l.b16 %v315
    %v1054 = vunpack.c.h.b16 %v315
    %v1055 = vunpack.c.l.b16 %v316
    %v1056 = vunpack.c.h.b16 %v316
    %v1057 = vunpack.c.l.b16 %v317
    %v1058 = vunpack.c.h.b16 %v317
    %v1059 = vunpack.c.l.b16 %v318
    %v1060 = vunpack.c.h.b16 %v318
    %v1061 = vunpack.c.l.b16 %v319
    %v1062 = vunpack.c.h.b16 %v319
    %v1063 = vunpack.c.l.b16 %v320
    %v1064 = vunpack.c.h.b16 %v320
    %v1065 = vunpack.c.l.b16 %v321
    %v1066 = vunpack.c.h.b16 %v321
    %v1067 = vunpack.c.l.b16 %v322
    %v1068 = vunpack.c.h.b16 %v322
    %v1069 = vunpack.c.l.b16 %v323
    %v1070 = vunpack.c.h.b16 %v323
    %v1071 = vunpack.c.l.b16 %v324
    %v1072 = vunpack.c.h.b16 %v324
    %v1073 = vunpack.c.l.b16 %v325
    %v1074 = vunpack.c.h.b16 %v325
    %v1075 = vunpack.c.l.b16 %v326
    %v1076 = vunpack.c.h.b16 %v326
    %v1077 = vunpack.c.l.b16 %v327
    %v1078 = vunpack.c.h.b16 %v327
    %v1079 = vunpack.c.l.b16 %v328
    %v1080 = vunpack.c.h.b16 %v328
    %v1081 = vunpack.c.l.b16 %v329
    %v1082 = vunpack.c.h.b16 %v329
    %v1083 = vunpack.c.l.b16 %v330
    %v1084 = vunpack.c.h.b16 %v330
    %v1085 = vunpack.c.l.b16 %v331
    %v1086 = vunpack.c.h.b16 %v331
    %v1087 = vunpack.c.l.b16 %v332
    %v1088 = vunpack.c.h.b16 %v332
    %v1089 = vunpack.c.l.b16 %v333
    %v1090 = vunpack.c.h.b16 %v333
    %v1091 = vunpack.c.l.b16 %v334
    %v1092 = vunpack.c.h.b16 %v334
    %v1093 = vunpack.c.l.b16 %v335
    %v1094 = vunpack.c.h.b16 %v335
    %v1095 = vunpack.c.l.b16 %v336
    %v1096 = vunpack.c.h.b16 %v336
    %v1097 = vunpack.c.l.b16 %v337
    %v1098 = vunpack.c.h.b16 %v337
    %v1099 = vunpack.c.l.b16 %v338
    %v1100 = vunpack.c.h.b16 %v338
    %v1101 = vunpack.c.l.b16 %v339
    %v1102 = vunpack.c.h.b16 %v339
    %v1103 = vunpack.c.l.b16 %v340
    %v1104 = vunpack.c.h.b16 %v340
    %v1105 = vunpack.c.l.b16 %v341
    %v1106 = vunpack.c.h.b16 %v341
    %v1107 = vunpack.c.l.b16 %v342
    %v1108 = vunpack.c.h.b16 %v342
    %v1109 = vunpack.c.l.b16 %v343
    %v1110 = vunpack.c.h.b16 %v343
    %v1111 = vunpack.c.l.b16 %v344
    %v1112 = vunpack.c.h.b16 %v344
    %v1113 = vunpack.c.l.b16 %v345
    %v1114 = vunpack.c.h.b16 %v345
    %v1115 = vunpack.c.l.b16 %v346
    %v1116 = vunpack.c.h.b16 %v346
    %v1117 = vunpack.c.l.b16 %v347
    %v1118 = vunpack.c.h.b16 %v347
    %v1119 = vunpack.c.l.b16 %v348
    %v1120 = vunpack.c.h.b16 %v348
    %v1121 = vunpack.c.l.b16 %v349
    %v1122 = vunpack.c.h.b16 %v349
    %v1123 = vunpack.c.l.b16 %v350
    %v1124 = vunpack.c.h.b16 %v350
    %v1125 = vunpack.c.l.b16 %v351
    %v1126 = vunpack.c.h.b16 %v351
    %v1127 = vunpack.c.l.b16 %v352
    %v1128 = vunpack.c.h.b16 %v352
    %v1129 = vunpack.c.l.b16 %v353
    %v1130 = vunpack.c.h.b16 %v353
    %v1131 = vunpack.c.l.b16 %v354
    %v1132 = vunpack.c.h.b16 %v354
    %v1133 = vunpack.c.l.b16 %v355
    %v1134 = vunpack.c.h.b16 %v355
    %v1135 = vunpack.c.l.b16 %v356
    %v1136 = vunpack.c.h.b16 %v356
    %v1137 = vunpack.c.l.b16 %v357
    %v1138 = vunpack.c.h.b16 %v357
    %v1139 = vunpack.c.l.b16 %v358
    %v1140 = vunpack.c.h.b16 %v358
    %v1141 = vunpack.c.l.b16 %v359
    %v1142 = vunpack.c.h.b16 %v359
    %v1143 = vunpack.c.l.b16 %v360
    %v1144 = vunpack.c.h.b16 %v360
    %v1145 = vunpack.c.l.b16 %v361
    %v1146 = vunpack.c.h.b16 %v361
    %v1147 = vunpack.c.l.b16 %v362
    %v1148 = vunpack.c.h.b16 %v362
    %v1149 = vunpack.c.l.b16 %v363
    %v1150 = vunpack.c.h.b16 %v363
    %v1151 = vunpack.c.l.b16 %v364
    %v1152 = vunpack.c.h.b16 %v364
    %v1153 = vunpack.c.l.b16 %v365
    %v1154 = vunpack.c.h.b16 %v365
    %v1155 = vunpack.c.l.b16 %v366
    %v1156 = vunpack.c.h.b16 %v366
    %v1157 = vunpack.c.l.b16 %v367
    %v1158 = vunpack.c.h.b16 %v367
    %v1159 = vunpack.c.l.b16 %v368
    %v1160 = vunpack.c.h.b16 %v368
    %v1161 = vunpack.c.l.b16 %v369
    %v1162 = vunpack.c.h.b16 %v369
    %v1163 = vunpack.c.l.b16 %v370
    %v1164 = vunpack.c.h.b16 %v370
    %v1165 = vunpack.c.l.b16 %v371
    %v1166 = vunpack.c.h.b16 %v371
    %v1167 = vunpack.c.l.b16 %v372
    %v1168 = vunpack.c.h.b16 %v372
    %v1169 = vunpack.c.l.b16 %v373
    %v1170 = vunpack.c.h.b16 %v373
    %v1171 = vunpack.c.l.b16 %v374
    %v1172 = vunpack.c.h.b16 %v374
    %v1173 = vunpack.c.l.b16 %v375
    %v1174 = vunpack.c.h.b16 %v375
    %v1175 = vunpack.c.l.b16 %v376
    %v1176 = vunpack.c.h.b16 %v376
    %v1177 = vunpack.c.l.b16 %v377
    %v1178 = vunpack.c.h.b16 %v377
    %v1179 = vunpack.c.l.b16 %v378
    %v1180 = vunpack.c.h.b16 %v378
    %v1181 = vunpack.c.l.b16 %v379
    %v1182 = vunpack.c.h.b16 %v379
    %v1183 = vunpack.c.l.b16 %v380
    %v1184 = vunpack.c.h.b16 %v380
    %v1185 = vunpack.c.l.b16 %v381
    %v1186 = vunpack.c.h.b16 %v381
    %v1187 = vunpack.c.l.b16 %v382
    %v1188 = vunpack.c.h.b16 %v382
    %v1189 = vunpack.c.l.b16 %v383
    %v1190 = vunpack.c.h.b16 %v383
    %v1191 = vunpack.c.l.b16 %v384
    %v1192 = vunpack.c.h.b16 %v384
    %v1193 = vunpack.c.l.b16 %v385
    %v1194 = vunpack.c.h.b16 %v385
    %v1195 = vunpack.c.l.b16 %v386
    %v1196 = vunpack.c.h.b16 %v386
    %v1197 = vunpack.c.l.b16 %v387
    %v1198 = vunpack.c.h.b16 %v387
    %v1199 = vunpack.c.l.b16 %v388
    %v1200 = vunpack.c.h.b16 %v388
    %v1201 = vunpack.c.l.b16 %v389
    %v1202 = vunpack.c.h.b16 %v389
    %v1203 = vunpack.c.l.b16 %v390
    %v1204 = vunpack.c.h.b16 %v390
    %v1205 = vunpack.c.l.b16 %v391
    %v1206 = vunpack.c.h.b16 %v391
    %v1207 = vunpack.c.l.b16 %v392
    %v1208 = vunpack.c.h.b16 %v392
    %v1209 = vunpack.c.l.b16 %v393
    %v1210 = vunpack.c.h.b16 %v393
    %v1211 = vunpack.c.l.b16 %v394
    %v1212 = vunpack.c.h.b16 %v394
    %v1213 = vunpack.c.l.b16 %v395
    %v1214 = vunpack.c.h.b16 %v395
    %v1215 = vunpack.c.l.b16 %v396
    %v1216 = vunpack.c.h.b16 %v396
    %v1217 = vunpack.c.l.b16 %v397
    %v1218 = vunpack.c.h.b16 %v397
    %v1219 = vunpack.c.l.b16 %v398
    %v1220 = vunpack.c.h.b16 %v398
    %v1221 = vunpack.c.l.b16 %v399
    %v1222 = vunpack.c.h.b16 %v399
    %v1223 = vunpack.c.l.b16 %v400
    %v1224 = vunpack.c.h.b16 %v400
    %v1225 = vunpack.c.l.b16 %v401
    %v1226 = vunpack.c.h.b16 %v401
    %v1227 = vunpack.c.l.b16 %v402
    %v1228 = vunpack.c.h.b16 %v402
    %v1229 = vunpack.c.l.b16 %v403
    %v1230 = vunpack.c.h.b16 %v403
    %v1231 = vunpack.c.l.b16 %v404
    %v1232 = vunpack.c.h.b16 %v404
    %v1233 = vunpack.c.l.b16 %v405
    %v1234 = vunpack.c.h.b16 %v405
    %v1235 = vunpack.c.l.b16 %v406
    %v1236 = vunpack.c.h.b16 %v406
    %v1237 = vunpack.c.l.b16 %v407
    %v1238 = vunpack.c.h.b16 %v407
    %v1239 = vunpack.c.l.b16 %v408
    %v1240 = vunpack.c.h.b16 %v408
    %v1241 = vunpack.c.l.b16 %v409
    %v1242 = vunpack.c.h.b16 %v409
    %v1243 = vunpack.c.l.b16 %v410
    %v1244 = vunpack.c.h.b16 %v410
    %v1245 = vunpack.c.l.b16 %v411
    %v1246 = vunpack.c.h.b16 %v411
    %v1247 = vunpack.c.l.b16 %v412
    %v1248 = vunpack.c.h.b16 %v412
    %v1249 = vunpack.c.l.b16 %v413
    %v1250 = vunpack.c.h.b16 %v413
    %v1251 = vunpack.c.l.b16 %v414
    %v1252 = vunpack.c.h.b16 %v414
    %v1253 = vunpack.c.l.b16 %v415
    %v1254 = vunpack.c.h.b16 %v415
    %v1255 = vunpack.c.l.b16 %v416
    %v1256 = vunpack.c.h.b16 %v416
    %v1257 = vunpack.c.l.b16 %v417
    %v1258 = vunpack.c.h.b16 %v417
    %v1259 = vunpack.c.l.b16 %v418
    %v1260 = vunpack.c.h.b16 %v418
    %v1261 = vunpack.c.l.b16 %v419
    %v1262 = vunpack.c.h.b16 %v419
    %v1263 = vunpack.c.l.b16 %v420
    %v1264 = vunpack.c.h.b16 %v420
    %v1265 = vunpack.c.l.b16 %v421
    %v1266 = vunpack.c.h.b16 %v421
    %v1267 = vunpack.c.l.b16 %v422
    %v1268 = vunpack.c.h.b16 %v422
    %v1269 = vunpack.c.l.b16 %v423
    %v1270 = vunpack.c.h.b16 %v423
    %v1271 = vunpack.c.l.b16 %v424
    %v1272 = vunpack.c.h.b16 %v424
    %v1273 = vunpack.c.l.b16 %v425
    %v1274 = vunpack.c.h.b16 %v425
    %v1275 = vunpack.c.l.b16 %v426
    %v1276 = vunpack.c.h.b16 %v426
    %v1277 = vunpack.c.l.b16 %v427
    %v1278 = vunpack.c.h.b16 %v427
    %v1279 = vunpack.c.l.b16 %v428
    %v1280 = vunpack.c.h.b16 %v428
    %v1281 = vunpack.c.l.b16 %v429
    %v1282 = vunpack.c.h.b16 %v429
    %v1283 = vunpack.c.l.b16 %v430
    %v1284 = vunpack.c.h.b16 %v430
    %v1285 = vunpack.c.l.b16 %v431
    %v1286 = vunpack.c.h.b16 %v431
    %v1287 = vunpack.c.l.b16 %v432
    %v1288 = vunpack.c.h.b16 %v432
    %v1289 = vunpack.c.l.b16 %v433
    %v1290 = vunpack.c.h.b16 %v433
    %v1291 = vunpack.c.l.b16 %v434
    %v1292 = vunpack.c.h.b16 %v434
    %v1293 = vunpack.c.l.b16 %v435
    %v1294 = vunpack.c.h.b16 %v435
    %v1295 = vunpack.c.l.b16 %v436
    %v1296 = vunpack.c.h.b16 %v436
    %v1297 = vunpack.c.l.b16 %v437
    %v1298 = vunpack.c.h.b16 %v437
    %v1299 = vunpack.c.l.b16 %v438
    %v1300 = vunpack.c.h.b16 %v438
    %v1301 = vunpack.c.l.b16 %v439
    %v1302 = vunpack.c.h.b16 %v439
    %v1303 = vunpack.c.l.b16 %v440
    %v1304 = vunpack.c.h.b16 %v440
    %v1305 = vunpack.c.l.b16 %v441
    %v1306 = vunpack.c.h.b16 %v441
    %v1307 = vunpack.c.l.b16 %v442
    %v1308 = vunpack.c.h.b16 %v442
    %v1309 = vunpack.c.l.b16 %v443
    %v1310 = vunpack.c.h.b16 %v443
    %v1311 = vunpack.c.l.b16 %v444
    %v1312 = vunpack.c.h.b16 %v444
    %v1313 = vunpack.c.l.b16 %v445
    %v1314 = vunpack.c.h.b16 %v445
    %v1315 = vunpack.c.l.b16 %v446
    %v1316 = vunpack.c.h.b16 %v446
    %v1317 = vunpack.c.l.b16 %v447
    %v1318 = vunpack.c.h.b16 %v447
    %v1319 = vunpack.c.l.b16 %v448
    %v1320 = vunpack.c.h.b16 %v448
    %v1321 = vunpack.c.l.b16 %v449
    %v1322 = vunpack.c.h.b16 %v449
    %v1323 = vunpack.c.l.b16 %v450
    %v1324 = vunpack.c.h.b16 %v450
    %v1325 = vunpack.c.l.b16 %v451
    %v1326 = vunpack.c.h.b16 %v451
    %v1327 = vunpack.c.l.b16 %v452
    %v1328 = vunpack.c.h.b16 %v452
    %v1329 = vunpack.c.l.b16 %v453
    %v1330 = vunpack.c.h.b16 %v453
    %v1331 = vunpack.c.l.b16 %v454
    %v1332 = vunpack.c.h.b16 %v454
    %v1333 = vunpack.c.l.b16 %v455
    %v1334 = vunpack.c.h.b16 %v455
    %v1335 = vunpack.c.l.b16 %v456
    %v1336 = vunpack.c.h.b16 %v456
    %v1337 = vunpack.c.l.b16 %v457
    %v1338 = vunpack.c.h.b16 %v457
    %v1339 = vunpack.c.l.b16 %v458
    %v1340 = vunpack.c.h.b16 %v458
    %v1341 = vunpack.c.l.b16 %v459
    %v1342 = vunpack.c.h.b16 %v459
    %v1343 = vunpack.c.l.b16 %v460
    %v1344 = vunpack.c.h.b16 %v460
    %v1345 = vunpack.c.l.b16 %v461
    %v1346 = vunpack.c.h.b16 %v461
    %v1347 = vunpack.c.l.b16 %v462
    %v1348 = vunpack.c.h.b16 %v462
    %v1349 = vunpack.c.l.b16 %v463
    %v1350 = vunpack.c.h.b16 %v463
    %v1351 = vunpack.c.l.b16 %v464
    %v1352 = vunpack.c.h.b16 %v464
    %v1353 = vunpack.c.l.b16 %v465
    %v1354 = vunpack.c.h.b16 %v465
    %v1355 = vunpack.c.l.b16 %v466
    %v1356 = vunpack.c.h.b16 %v466
    %v1357 = vunpack.c.l.b16 %v467
    %v1358 = vunpack.c.h.b16 %v467
    %v1359 = vunpack.c.l.b16 %v468
    %v1360 = vunpack.c.h.b16 %v468
    %v1361 = vunpack.c.l.b16 %v469
    %v1362 = vunpack.c.h.b16 %v469
    %v1363 = vunpack.c.l.b16 %v470
    %v1364 = vunpack.c.h.b16 %v470
    %v1365 = vunpack.c.l.b16 %v471
    %v1366 = vunpack.c.h.b16 %v471
    %v1367 = vunpack.c.l.b16 %v472
    %v1368 = vunpack.c.h.b16 %v472
    %v1369 = vpack.c.b16 %v799, %v793
    %v1370 = vpack.c.b16 %v800, %v794
    %v1371 = vpack.c.b16 %v801, %v795
    %v1372 = vpack.c.b16 %v802, %v796
    %v1373 = vpack.c.b16 %v803, %v797
    %v1374 = vpack.c.b16 %v804, %v798
    %v1375 = vpack.c.b16 %v811, %v805
    %v1376 = vpack.c.b16 %v812, %v806
    %v1377 = vpack.c.b16 %v813, %v807
    %v1378 = vpack.c.b16 %v814, %v808
    %v1379 = vpack.c.b16 %v815, %v809
    %v1380 = vpack.c.b16 %v816, %v810
    %v1381 = vpack.c.b16 %v823, %v817
    %v1382 = vpack.c.b16 %v824, %v818
    %v1383 = vpack.c.b16 %v825, %v819
    %v1384 = vpack.c.b16 %v826, %v820
    %v1385 = vpack.c.b16 %v827, %v821
    %v1386 = vpack.c.b16 %v828, %v822
    %v1387 = vpack.c.b16 %v835, %v829
    %v1388 = vpack.c.b16 %v836, %v830
    %v1389 = vpack.c.b16 %v837, %v831
    %v1390 = vpack.c.b16 %v838, %v832
    %v1391 = vpack.c.b16 %v839, %v833
    %v1392 = vpack.c.b16 %v840, %v834
    %v1393 = vpack.c.b16 %v847, %v841
    %v1394 = vpack.c.b16 %v848, %v842
    %v1395 = vpack.c.b16 %v849, %v843
    %v1396 = vpack.c.b16 %v850, %v844
    %v1397 = vpack.c.b16 %v851, %v845
    %v1398 = vpack.c.b16 %v852, %v846
    %v1399 = vpack.c.b16 %v859, %v853
    %v1400 = vpack.c.b16 %v860, %v854
    %v1401 = vpack.c.b16 %v861, %v855
    %v1402 = vpack.c.b16 %v862, %v856
    %v1403 = vpack.c.b16 %v863, %v857
    %v1404 = vpack.c.b16 %v864, %v858
    %v1405 = vpack.c.b16 %v871, %v865
    %v1406 = vpack.c.b16 %v872, %v866
    %v1407 = vpack.c.b16 %v873, %v867
    %v1408 = vpack.c.b16 %v874, %v868
    %v1409 = vpack.c.b16 %v875, %v869
    %v1410 = vpack.c.b16 %v876, %v870
    %v1411 = vpack.c.b16 %v883, %v877
    %v1412 = vpack.c.b16 %v884, %v878
    %v1413 = vpack.c.b16 %v885, %v879
    %v1414 = vpack.c.b16 %v886, %v880
    %v1415 = vpack.c.b16 %v887, %v881
    %v1416 = vpack.c.b16 %v888, %v882
    %v1417 = vpack.c.b16 %v895, %v889
    %v1418 = vpack.c.b16 %v896, %v890
    %v1419 = vpack.c.b16 %v897, %v891
    %v1420 = vpack.c.b16 %v898, %v892
    %v1421 = vpack.c.b16 %v899, %v893
    %v1422 = vpack.c.b16 %v900, %v894
    %v1423 = vpack.c.b16 %v907, %v901
    %v1424 = vpack.c.b16 %v908, %v902
    %v1425 = vpack.c.b16 %v909, %v903
    %v1426 = vpack.c.b16 %v910, %v904
    %v1427 = vpack.c.b16 %v911, %v905
    %v1428 = vpack.c.b16 %v912, %v906
    %v1429 = vpack.c.b16 %v919, %v913
    %v1430 = vpack.c.b16 %v920, %v914
    %v1431 = vpack.c.b16 %v921, %v915
    %v1432 = vpack.c.b16 %v922, %v916
    %v1433 = vpack.c.b16 %v923, %v917
    %v1434 = vpack.c.b16 %v924, %v918
    %v1435 = vpack.c.b16 %v931, %v925
    %v1436 = vpack.c.b16 %v932, %v926
    %v1437 = vpack.c.b16 %v933, %v927
    %v1438 = vpack.c.b16 %v934, %v928
    %v1439 = vpack.c.b16 %v935, %v929
    %v1440 = vpack.c.b16 %v936, %v930
    %v1441 = vpack.c.b16 %v943, %v937
    %v1442 = vpack.c.b16 %v944, %v938
    %v1443 = vpack.c.b16 %v945, %v939
    %v1444 = vpack.c.b16 %v946, %v940
    %v1445 = vpack.c.b16 %v947, %v941
    %v1446 = vpack.c.b16 %v948, %v942
    %v1447 = vpack.c.b16 %v955, %v949
    %v1448 = vpack.c.b16 %v956, %v950
    %v1449 = vpack.c.b16 %v957, %v951
    %v1450 = vpack.c.b16 %v958, %v952
    %v1451 = vpack.c.b16 %v959, %v953
    %v1452 = vpack.c.b16 %v960, %v954
    %v1453 = vpack.c.b16 %v967, %v961
    %v1454 = vpack.c.b16 %v968, %v962
    %v1455 = vpack.c.b16 %v969, %v963
    %v1456 = vpack.c.b16 %v970, %v964
    %v1457 = vpack.c.b16 %v971, %v965
    %v1458 = vpack.c.b16 %v972, %v966
    %v1459 = vpack.c.b16 %v979, %v973
    %v1460 = vpack.c.b16 %v980, %v974
    %v1461 = vpack.c.b16 %v981, %v975
    %v1462 = vpack.c.b16 %v982, %v976
    %v1463 = vpack.c.b16 %v983, %v977
    %v1464 = vpack.c.b16 %v984, %v978
    %v1465 = vpack.c.b16 %v991, %v985
    %v1466 = vpack.c.b16 %v992, %v986
    %v1467 = vpack.c.b16 %v993, %v987
    %v1468 = vpack.c.b16 %v994, %v988
    %v1469 = vpack.c.b16 %v995, %v989
    %v1470 = vpack.c.b16 %v996, %v990
    %v1471 = vpack.c.b16 %v1003, %v997
    %v1472 = vpack.c.b16 %v1004, %v998
    %v1473 = vpack.c.b16 %v1005, %v999
    %v1474 = vpack.c.b16 %v1006, %v1000
    %v1475 = vpack.c.b16 %v1007, %v1001
    %v1476 = vpack.c.b16 %v1008, %v1002
    %v1477 = vpack.c.b16 %v1015, %v1009
    %v1478 = vpack.c.b16 %v1016, %v1010
    %v1479 = vpack.c.b16 %v1017, %v1011
    %v1480 = vpack.c.b16 %v1018, %v1012
    %v1481 = vpack.c.b16 %v1019, %v1013
    %v1482 = vpack.c.b16 %v1020, %v1014
    %v1483 = vpack.c.b16 %v1027, %v1021
    %v1484 = vpack.c.b16 %v1028, %v1022
    %v1485 = vpack.c.b16 %v1029, %v1023
    %v1486 = vpack.c.b16 %v1030, %v1024
    %v1487 = vpack.c.b16 %v1031, %v1025
    %v1488 = vpack.c.b16 %v1032, %v1026
    %v1489 = vpack.c.b16 %v1039, %v1033
    %v1490 = vpack.c.b16 %v1040, %v1034
    %v1491 = vpack.c.b16 %v1041, %v1035
    %v1492 = vpack.c.b16 %v1042, %v1036
    %v1493 = vpack.c.b16 %v1043, %v1037
    %v1494 = vpack.c.b16 %v1044, %v1038
    %v1495 = vpack.c.b16 %v1051, %v1045
    %v1496 = vpack.c.b16 %v1052, %v1046
    %v1497 = vpack.c.b16 %v1053, %v1047
    %v1498 = vpack.c.b16 %v1054, %v1048
    %v1499 = vpack.c.b16 %v1055, %v1049
    %v1500 = vpack.c.b16 %v1056, %v1050
    %v1501 = vpack.c.b16 %v1063, %v1057
    %v1502 = vpack.c.b16 %v1064, %v1058
    %v1503 = vpack.c.b16 %v1065, %v1059
    %v1504 = vpack.c.b16 %v1066, %v1060
    %v1505 = vpack.c.b16 %v1067, %v1061
    %v1506 = vpack.c.b16 %v1068, %v1062
    %v1507 = vpack.c.b16 %v1075, %v1069
    %v1508 = vpack.c.b16 %v1076, %v1070
    %v1509 = vpack.c.b16 %v1077, %v1071
    %v1510 = vpack.c.b16 %v1078, %v1072
    %v1511 = vpack.c.b16 %v1079, %v1073
    %v1512 = vpack.c.b16 %v1080, %v1074
    %v1513 = vpack.c.b16 %v1087, %v1081
    %v1514 = vpack.c.b16 %v1088, %v1082
    %v1515 = vpack.c.b16 %v1089, %v1083
    %v1516 = vpack.c.b16 %v1090, %v1084
    %v1517 = vpack.c.b16 %v1091, %v1085
    %v1518 = vpack.c.b16 %v1092, %v1086
    %v1519 = vpack.c.b16 %v1099, %v1093
    %v1520 = vpack.c.b16 %v1100, %v1094
    %v1521 = vpack.c.b16 %v1101, %v1095
    %v1522 = vpack.c.b16 %v1102, %v1096
    %v1523 = vpack.c.b16 %v1103, %v1097
    %v1524 = vpack.c.b16 %v1104, %v1098
    %v1525 = vpack.c.b16 %v1111, %v1105
    %v1526 = vpack.c.b16 %v1112, %v1106
    %v1527 = vpack.c.b16 %v1113, %v1107
    %v1528 = vpack.c.b16 %v1114, %v1108
    %v1529 = vpack.c.b16 %v1115, %v1109
    %v1530 = vpack.c.b16 %v1116, %v1110
    %v1531 = vpack.c.b16 %v1123, %v1117
    %v1532 = vpack.c.b16 %v1124, %v1118
    %v1533 = vpack.c.b16 %v1125, %v1119
    %v1534 = vpack.c.b16 %v1126, %v1120
    %v1535 = vpack.c.b16 %v1127, %v1121
    %v1536 = vpack.c.b16 %v1128, %v1122
    %v1537 = vpack.c.b16 %v1135, %v1129
    %v1538 = vpack.c.b16 %v1136, %v1130
    %v1539 = vpack.c.b16 %v1137, %v1131
    %v1540 = vpack.c.b16 %v1138, %v1132
    %v1541 = vpack.c.b16 %v1139, %v1133
    %v1542 = vpack.c.b16 %v1140, %v1134
    %v1543 = vpack.c.b16 %v1147, %v1141
    %v1544 = vpack.c.b16 %v1148, %v1142
    %v1545 = vpack.c.b16 %v1149, %v1143
    %v1546 = vpack.c.b16 %v1150, %v1144
    %v1547 = vpack.c.b16 %v1151, %v1145
    %v1548 = vpack.c.b16 %v1152, %v1146
    %v1549 = vpack.c.b16 %v1159, %v1153
    %v1550 = vpack.c.b16 %v1160, %v1154
    %v1551 = vpack.c.b16 %v1161, %v1155
    %v1552 = vpack.c.b16 %v1162, %v1156
    %v1553 = vpack.c.b16 %v1163, %v1157
    %v1554 = vpack.c.b16 %v1164, %v1158
    %v1555 = vpack.c.b16 %v1171, %v1165
    %v1556 = vpack.c.b16 %v1172, %v1166
    %v1557 = vpack.c.b16 %v1173, %v1167
    %v1558 = vpack.c.b16 %v1174, %v1168
    %v1559 = vpack.c.b16 %v1175, %v1169
    %v1560 = vpack.c.b16 %v1176, %v1170
    %v1561 = vpack.c.b16 %v1183, %v1177
    %v1562 = vpack.c.b16 %v1184, %v1178
    %v1563 = vpack.c.b16 %v1185, %v1179
    %v1564 = vpack.c.b16 %v1186, %v1180
    %v1565 = vpack.c.b16 %v1187, %v1181
    %v1566 = vpack.c.b16 %v1188, %v1182
    %v1567 = vpack.c.b16 %v1195, %v1189
    %v1568 = vpack.c.b16 %v1196, %v1190
    %v1569 = vpack.c.b16 %v1197, %v1191
    %v1570 = vpack.c.b16 %v1198, %v1192
    %v1571 = vpack.c.b16 %v1199, %v1193
    %v1572 = vpack.c.b16 %v1200, %v1194
    %v1573 = vpack.c.b16 %v1207, %v1201
    %v1574 = vpack.c.b16 %v1208, %v1202
    %v1575 = vpack.c.b16 %v1209, %v1203
    %v1576 = vpack.c.b16 %v1210, %v1204
    %v1577 = vpack.c.b16 %v1211, %v1205
    %v1578 = vpack.c.b16 %v1212, %v1206
    %v1579 = vpack.c.b16 %v1219, %v1213
    %v1580 = vpack.c.b16 %v1220, %v1214
    %v1581 = vpack.c.b16 %v1221, %v1215
    %v1582 = vpack.c.b16 %v1222, %v1216
    %v1583 = vpack.c.b16 %v1223, %v1217
    %v1584 = vpack.c.b16 %v1224, %v1218
    %v1585 = vpack.c.b16 %v1231, %v1225
    %v1586 = vpack.c.b16 %v1232, %v1226
    %v1587 = vpack.c.b16 %v1233, %v1227
    %v1588 = vpack.c.b16 %v1234, %v1228
    %v1589 = vpack.c.b16 %v1235, %v1229
    %v1590 = vpack.c.b16 %v1236, %v1230
    %v1591 = vpack.c.b16 %v1243, %v1237
    %v1592 = vpack.c.b16 %v1244, %v1238
    %v1593 = vpack.c.b16 %v1245, %v1239
    %v1594 = vpack.c.b16 %v1246, %v1240
    %v1595 = vpack.c.b16 %v1247, %v1241
    %v1596 = vpack.c.b16 %v1248, %v1242
    %v1597 = vpack.c.b16 %v1255, %v1249
    %v1598 = vpack.c.b16 %v1256, %v1250
    %v1599 = vpack.c.b16 %v1257, %v1251
    %v1600 = vpack.c.b16 %v1258, %v1252
    %v1601 = vpack.c.b16 %v1259, %v1253
    %v1602 = vpack.c.b16 %v1260, %v1254
    %v1603 = vpack.c.b16 %v1267, %v1261
    %v1604 = vpack.c.b16 %v1268, %v1262
    %v1605 = vpack.c.b16 %v1269, %v1263
    %v1606 = vpack.c.b16 %v1270, %v1264
    %v1607 = vpack.c.b16 %v1271, %v1265
    %v1608 = vpack.c.b16 %v1272, %v1266
    %v1609 = vpack.c.b16 %v1279, %v1273
    %v1610 = vpack.c.b16 %v1280, %v1274
    %v1611 = vpack.c.b16 %v1281, %v1275
    %v1612 = vpack.c.b16 %v1282, %v1276
    %v1613 = vpack.c.b16 %v1283, %v1277
    %v1614 = vpack.c.b16 %v1284, %v1278
    %v1615 = vpack.c.b16 %v1291, %v1285
    %v1616 = vpack.c.b16 %v1292, %v1286
    %v1617 = vpack.c.b16 %v1293, %v1287
    %v1618 = vpack.c.b16 %v1294, %v1288
    %v1619 = vpack.c.b16 %v1295, %v1289
    %v1620 = vpack.c.b16 %v1296, %v1290
    %v1621 = vpack.c.b16 %v1303, %v1297
    %v1622 = vpack.c.b16 %v1304, %v1298
    %v1623 = vpack.c.b16 %v1305, %v1299
    %v1624 = vpack.c.b16 %v1306, %v1300
    %v1625 = vpack.c.b16 %v1307, %v1301
    %v1626 = vpack.c.b16 %v1308, %v1302
    %v1627 = vpack.c.b16 %v1315, %v1309
    %v1628 = vpack.c.b16 %v1316, %v1310
    %v1629 = vpack.c.b16 %v1317, %v1311
    %v1630 = vpack.c.b16 %v1318, %v1312
    %v1631 = vpack.c.b16 %v1319, %v1313
    %v1632 = vpack.c.b16 %v1320, %v1314
    %v1633 = vpack.c.b16 %v1327, %v1321
    %v1634 = vpack.c.b16 %v1328, %v1322
    %v1635 = vpack.c.b16 %v1329, %v1323
    %v1636 = vpack.c.b16 %v1330, %v1324
    %v1637 = vpack.c.b16 %v1331, %v1325
    %v1638 = vpack.c.b16 %v1332, %v1326
    %v1639 = vpack.c.b16 %v1339, %v1333
    %v1640 = vpack.c.b16 %v1340, %v1334
    %v1641 = vpack.c.b16 %v1341, %v1335
    %v1642 = vpack.c.b16 %v1342, %v1336
    %v1643 = vpack.c.b16 %v1343, %v1337
    %v1644 = vpack.c.b16 %v1344, %v1338
    %v1645 = vpack.c.b16 %v1351, %v1345
    %v1646 = vpack.c.b16 %v1352, %v1346
    %v1647 = vpack.c.b16 %v1353, %v1347
    %v1648 = vpack.c.b16 %v1354, %v1348
    %v1649 = vpack.c.b16 %v1355, %v1349
    %v1650 = vpack.c.b16 %v1356, %v1350
    %v1651 = vpack.c.b16 %v1363, %v1357
    %v1652 = vpack.c.b16 %v1364, %v1358
    %v1653 = vpack.c.b16 %v1365, %v1359
    %v1654 = vpack.c.b16 %v1366, %v1360
    %v1655 = vpack.c.b16 %v1367, %v1361
    %v1656 = vpack.c.b16 %v1368, %v1362
    %1945 = vmatprep.subr.bf16.mxu0 %v1370
    %1946 = vmatpush1.bf16.msra.mxu0 %v1369
    %1947 = vmatprep.subr.bf16.mxu0 %v1376
    %1948 = vmatpush1.bf16.msra.mxu0 %v1375
    %1949 = vmatprep.subr.bf16.mxu0 %v1382
    %1950 = vmatpush1.bf16.msra.mxu0 %v1381
    %1951 = vmatprep.subr.bf16.mxu0 %v1388
    %1952 = vmatpush1.bf16.msra.mxu0 %v1387
    %1953 = vmatprep.subr.bf16.mxu0 %v1394
    %1954 = vmatpush1.bf16.msra.mxu0 %v1393
    %1955 = vmatprep.subr.bf16.mxu0 %v1400
    %1956 = vmatpush1.bf16.msra.mxu0 %v1399
    %1957 = vmatprep.subr.bf16.mxu0 %v1406
    %1958 = vmatpush1.bf16.msra.mxu0 %v1405
    %1959 = vmatprep.subr.bf16.mxu0 %v1412
    %1960 = vmatpush1.bf16.msra.mxu0 %v1411
    %1961 = vmatprep.subr.bf16.mxu0 %v1418
    %1962 = vmatpush1.bf16.msra.mxu0 %v1417
    %1963 = vmatprep.subr.bf16.mxu0 %v1424
    %1964 = vmatpush1.bf16.msra.mxu0 %v1423
    %1965 = vmatprep.subr.bf16.mxu0 %v1430
    %1966 = vmatpush1.bf16.msra.mxu0 %v1429
    %1967 = vmatprep.subr.bf16.mxu0 %v1436
    %1968 = vmatpush1.bf16.msra.mxu0 %v1435
    %1969 = vmatprep.subr.bf16.mxu0 %v1442
    %1970 = vmatpush1.bf16.msra.mxu0 %v1441
    %1971 = vmatprep.subr.bf16.mxu0 %v1448
    %1972 = vmatpush1.bf16.msra.mxu0 %v1447
    %1973 = vmatprep.subr.bf16.mxu0 %v1454
    %1974 = vmatpush1.bf16.msra.mxu0 %v1453
    %1975 = vmatprep.subr.bf16.mxu0 %v1460
    %1976 = vmatpush1.bf16.msra.mxu0 %v1459
    %1977 = vmatprep.mubr.bf16.mxu0 %v180
    %1978 = vmatmul.mubr.bf16.gmra.mrb[0].mxu0 %v179
    %v1979 = vpop.f32.mrb[0].mxu0
    %v1980 = vadd.f32 %v478, %v1979
    %v1981 = vpop.f32.mrb[0].mxu0
    %v1982 = vadd.f32 %v482, %v1981
    %v1983 = vpop.f32.mrb[0].mxu0
    %v1984 = vpop.f32.mrb[0].mxu0
    %1985 = vdwg.mxu0
    %1986 = vmatprep.subr.bf16.mxu0 %v1466
    %1987 = vmatpush1.bf16.msra.mxu0 %v1465
    %1988 = vmatprep.subr.bf16.mxu0 %v1472
    %1989 = vmatpush1.bf16.msra.mxu0 %v1471
    %1990 = vmatprep.subr.bf16.mxu0 %v1478
    %1991 = vmatpush1.bf16.msra.mxu0 %v1477
    %1992 = vmatprep.subr.bf16.mxu0 %v1484
    %1993 = vmatpush1.bf16.msra.mxu0 %v1483
    %1994 = vmatprep.subr.bf16.mxu0 %v1490
    %1995 = vmatpush1.bf16.msra.mxu0 %v1489
    %1996 = vmatprep.subr.bf16.mxu0 %v1496
    %1997 = vmatpush1.bf16.msra.mxu0 %v1495
    %1998 = vmatprep.subr.bf16.mxu0 %v1502
    %1999 = vmatpush1.bf16.msra.mxu0 %v1501
    %2000 = vmatprep.subr.bf16.mxu0 %v1508
    %2001 = vmatpush1.bf16.msra.mxu0 %v1507
    %2002 = vmatprep.subr.bf16.mxu0 %v1514
    %2003 = vmatpush1.bf16.msra.mxu0 %v1513
    %2004 = vmatprep.subr.bf16.mxu0 %v1520
    %2005 = vmatpush1.bf16.msra.mxu0 %v1519
    %2006 = vmatprep.subr.bf16.mxu0 %v1526
    %2007 = vmatpush1.bf16.msra.mxu0 %v1525
    %2008 = vmatprep.subr.bf16.mxu0 %v1532
    %2009 = vmatpush1.bf16.msra.mxu0 %v1531
    %2010 = vmatprep.subr.bf16.mxu0 %v1538
    %2011 = vmatpush1.bf16.msra.mxu0 %v1537
    %2012 = vmatprep.subr.bf16.mxu0 %v1544
    %2013 = vmatpush1.bf16.msra.mxu0 %v1543
    %2014 = vmatprep.subr.bf16.mxu0 %v1550
    %2015 = vmatpush1.bf16.msra.mxu0 %v1549
    %2016 = vmatprep.subr.bf16.mxu0 %v1556
    %2017 = vmatpush1.bf16.msra.mxu0 %v1555
    %2018 = vmatprep.mubr.bf16.mxu0 %v182
    %2019 = vmatmul.mubr.bf16.gmra.mrb[0].mxu0 %v181
    %v2020 = vpop.f32.mrb[0].mxu0
    %v2021 = vadd.f32 %v1980, %v2020
    %v2022 = vpop.f32.mrb[0].mxu0
    %v2023 = vadd.f32 %v1982, %v2022
    %v2024 = vpop.f32.mrb[0].mxu0
    %v2025 = vpop.f32.mrb[0].mxu0
    %2026 = vdwg.mxu0
    %2027 = vmatprep.subr.bf16.mxu0 %v1562
    %2028 = vmatpush1.bf16.msra.mxu0 %v1561
    %2029 = vmatprep.subr.bf16.mxu0 %v1568
    %2030 = vmatpush1.bf16.msra.mxu0 %v1567
    %2031 = vmatprep.subr.bf16.mxu0 %v1574
    %2032 = vmatpush1.bf16.msra.mxu0 %v1573
    %2033 = vmatprep.subr.bf16.mxu0 %v1580
    %2034 = vmatpush1.bf16.msra.mxu0 %v1579
    %2035 = vmatprep.subr.bf16.mxu0 %v1586
    %2036 = vmatpush1.bf16.msra.mxu0 %v1585
    %2037 = vmatprep.subr.bf16.mxu0 %v1592
    %2038 = vmatpush1.bf16.msra.mxu0 %v1591
    %2039 = vmatprep.subr.bf16.mxu0 %v1598
    %2040 = vmatpush1.bf16.msra.mxu0 %v1597
    %2041 = vmatprep.subr.bf16.mxu0 %v1604
    %2042 = vmatpush1.bf16.msra.mxu0 %v1603
    %2043 = vmatprep.subr.bf16.mxu0 %v1610
    %2044 = vmatpush1.bf16.msra.mxu0 %v1609
    %2045 = vmatprep.subr.bf16.mxu0 %v1616
    %2046 = vmatpush1.bf16.msra.mxu0 %v1615
    %2047 = vmatprep.subr.bf16.mxu0 %v1622
    %2048 = vmatpush1.bf16.msra.mxu0 %v1621
    %2049 = vmatprep.subr.bf16.mxu0 %v1628
    %2050 = vmatpush1.bf16.msra.mxu0 %v1627
    %2051 = vmatprep.subr.bf16.mxu0 %v1634
    %2052 = vmatpush1.bf16.msra.mxu0 %v1633
    %2053 = vmatprep.subr.bf16.mxu0 %v1640
    %2054 = vmatpush1.bf16.msra.mxu0 %v1639
    %2055 = vmatprep.subr.bf16.mxu0 %v1646
    %2056 = vmatpush1.bf16.msra.mxu0 %v1645
    %2057 = vmatprep.subr.bf16.mxu0 %v1652
    %2058 = vmatpush1.bf16.msra.mxu0 %v1651
    %2059 = vmatprep.mubr.bf16.mxu0 %v184
    %2060 = vmatmul.mubr.bf16.gmra.mrb[0].mxu0 %v183
    %v2061 = vpop.f32.mrb[0].mxu0
    %v2062 = vadd.f32 %v2021, %v2061
    %v2063 = vpop.f32.mrb[0].mxu0
    %v2064 = vadd.f32 %v2023, %v2063
    %v2065 = vpop.f32.mrb[0].mxu0
    %v2066 = vpop.f32.mrb[0].mxu0
    %2067 = vdwg.mxu0
    %2068 = vmatprep.subr.bf16.mxu0 %v1372
    %2069 = vmatpush1.bf16.msra.mxu0 %v1371
    %2070 = vmatprep.subr.bf16.mxu0 %v1378
    %2071 = vmatpush1.bf16.msra.mxu0 %v1377
    %2072 = vmatprep.subr.bf16.mxu0 %v1384
    %2073 = vmatpush1.bf16.msra.mxu0 %v1383
    %2074 = vmatprep.subr.bf16.mxu0 %v1390
    %2075 = vmatpush1.bf16.msra.mxu0 %v1389
    %2076 = vmatprep.subr.bf16.mxu0 %v1396
    %2077 = vmatpush1.bf16.msra.mxu0 %v1395
    %2078 = vmatprep.subr.bf16.mxu0 %v1402
    %2079 = vmatpush1.bf16.msra.mxu0 %v1401
    %2080 = vmatprep.subr.bf16.mxu0 %v1408
    %2081 = vmatpush1.bf16.msra.mxu0 %v1407
    %2082 = vmatprep.subr.bf16.mxu0 %v1414
    %2083 = vmatpush1.bf16.msra.mxu0 %v1413
    %2084 = vmatprep.subr.bf16.mxu0 %v1420
    %2085 = vmatpush1.bf16.msra.mxu0 %v1419
    %2086 = vmatprep.subr.bf16.mxu0 %v1426
    %2087 = vmatpush1.bf16.msra.mxu0 %v1425
    %2088 = vmatprep.subr.bf16.mxu0 %v1432
    %2089 = vmatpush1.bf16.msra.mxu0 %v1431
    %2090 = vmatprep.subr.bf16.mxu0 %v1438
    %2091 = vmatpush1.bf16.msra.mxu0 %v1437
    %2092 = vmatprep.subr.bf16.mxu0 %v1444
    %2093 = vmatpush1.bf16.msra.mxu0 %v1443
    %2094 = vmatprep.subr.bf16.mxu0 %v1450
    %2095 = vmatpush1.bf16.msra.mxu0 %v1449
    %2096 = vmatprep.subr.bf16.mxu0 %v1456
    %2097 = vmatpush1.bf16.msra.mxu0 %v1455
    %2098 = vmatprep.subr.bf16.mxu0 %v1462
    %2099 = vmatpush1.bf16.msra.mxu0 %v1461
    %2100 = vmatprep.mubr.bf16.mxu0 %v180
    %2101 = vmatmul.mubr.bf16.gmra.mrb[0].mxu0 %v179
    %v2102 = vpop.f32.mrb[0].mxu0
    %v2103 = vadd.f32 %v486, %v2102
    %v2104 = vpop.f32.mrb[0].mxu0
    %v2105 = vadd.f32 %v490, %v2104
    %v2106 = vpop.f32.mrb[0].mxu0
    %v2107 = vpop.f32.mrb[0].mxu0
    %2108 = vdwg.mxu0
    %2109 = vmatprep.subr.bf16.mxu0 %v1468
    %2110 = vmatpush1.bf16.msra.mxu0 %v1467
    %2111 = vmatprep.subr.bf16.mxu0 %v1474
    %2112 = vmatpush1.bf16.msra.mxu0 %v1473
    %2113 = vmatprep.subr.bf16.mxu0 %v1480
    %2114 = vmatpush1.bf16.msra.mxu0 %v1479
    %2115 = vmatprep.subr.bf16.mxu0 %v1486
    %2116 = vmatpush1.bf16.msra.mxu0 %v1485
    %2117 = vmatprep.subr.bf16.mxu0 %v1492
    %2118 = vmatpush1.bf16.msra.mxu0 %v1491
    %2119 = vmatprep.subr.bf16.mxu0 %v1498
    %2120 = vmatpush1.bf16.msra.mxu0 %v1497
    %2121 = vmatprep.subr.bf16.mxu0 %v1504
    %2122 = vmatpush1.bf16.msra.mxu0 %v1503
    %2123 = vmatprep.subr.bf16.mxu0 %v1510
    %2124 = vmatpush1.bf16.msra.mxu0 %v1509
    %2125 = vmatprep.subr.bf16.mxu0 %v1516
    %2126 = vmatpush1.bf16.msra.mxu0 %v1515
    %2127 = vmatprep.subr.bf16.mxu0 %v1522
    %2128 = vmatpush1.bf16.msra.mxu0 %v1521
    %2129 = vmatprep.subr.bf16.mxu0 %v1528
    %2130 = vmatpush1.bf16.msra.mxu0 %v1527
    %2131 = vmatprep.subr.bf16.mxu0 %v1534
    %2132 = vmatpush1.bf16.msra.mxu0 %v1533
    %2133 = vmatprep.subr.bf16.mxu0 %v1540
    %2134 = vmatpush1.bf16.msra.mxu0 %v1539
    %2135 = vmatprep.subr.bf16.mxu0 %v1546
    %2136 = vmatpush1.bf16.msra.mxu0 %v1545
    %2137 = vmatprep.subr.bf16.mxu0 %v1552
    %2138 = vmatpush1.bf16.msra.mxu0 %v1551
    %2139 = vmatprep.subr.bf16.mxu0 %v1558
    %2140 = vmatpush1.bf16.msra.mxu0 %v1557
    %2141 = vmatprep.mubr.bf16.mxu0 %v182
    %2142 = vmatmul.mubr.bf16.gmra.mrb[0].mxu0 %v181
    %v2143 = vpop.f32.mrb[0].mxu0
    %v2144 = vadd.f32 %v2103, %v2143
    %v2145 = vpop.f32.mrb[0].mxu0
    %v2146 = vadd.f32 %v2105, %v2145
    %v2147 = vpop.f32.mrb[0].mxu0
    %v2148 = vpop.f32.mrb[0].mxu0
    %2149 = vdwg.mxu0
    %2150 = vmatprep.subr.bf16.mxu0 %v1564
    %2151 = vmatpush1.bf16.msra.mxu0 %v1563
    %2152 = vmatprep.subr.bf16.mxu0 %v1570
    %2153 = vmatpush1.bf16.msra.mxu0 %v1569
    %2154 = vmatprep.subr.bf16.mxu0 %v1576
    %2155 = vmatpush1.bf16.msra.mxu0 %v1575
    %2156 = vmatprep.subr.bf16.mxu0 %v1582
    %2157 = vmatpush1.bf16.msra.mxu0 %v1581
    %2158 = vmatprep.subr.bf16.mxu0 %v1588
    %2159 = vmatpush1.bf16.msra.mxu0 %v1587
    %2160 = vmatprep.subr.bf16.mxu0 %v1594
    %2161 = vmatpush1.bf16.msra.mxu0 %v1593
    %2162 = vmatprep.subr.bf16.mxu0 %v1600
    %2163 = vmatpush1.bf16.msra.mxu0 %v1599
    %2164 = vmatprep.subr.bf16.mxu0 %v1606
    %2165 = vmatpush1.bf16.msra.mxu0 %v1605
    %2166 = vmatprep.subr.bf16.mxu0 %v1612
    %2167 = vmatpush1.bf16.msra.mxu0 %v1611
    %2168 = vmatprep.subr.bf16.mxu0 %v1618
    %2169 = vmatpush1.bf16.msra.mxu0 %v1617
    %2170 = vmatprep.subr.bf16.mxu0 %v1624
    %2171 = vmatpush1.bf16.msra.mxu0 %v1623
    %2172 = vmatprep.subr.bf16.mxu0 %v1630
    %2173 = vmatpush1.bf16.msra.mxu0 %v1629
    %2174 = vmatprep.subr.bf16.mxu0 %v1636
    %2175 = vmatpush1.bf16.msra.mxu0 %v1635
    %2176 = vmatprep.subr.bf16.mxu0 %v1642
    %2177 = vmatpush1.bf16.msra.mxu0 %v1641
    %2178 = vmatprep.subr.bf16.mxu0 %v1648
    %2179 = vmatpush1.bf16.msra.mxu0 %v1647
    %2180 = vmatprep.subr.bf16.mxu0 %v1654
    %2181 = vmatpush1.bf16.msra.mxu0 %v1653
    %2182 = vmatprep.mubr.bf16.mxu0 %v184
    %2183 = vmatmul.mubr.bf16.gmra.mrb[0].mxu0 %v183
    %v2184 = vpop.f32.mrb[0].mxu0
    %v2185 = vadd.f32 %v2144, %v2184
    %v2186 = vpop.f32.mrb[0].mxu0
    %v2187 = vadd.f32 %v2146, %v2186
    %v2188 = vpop.f32.mrb[0].mxu0
    %v2189 = vpop.f32.mrb[0].mxu0
    %2190 = vdwg.mxu0
    %2191 = vmatprep.subr.bf16.mxu0 %v1374
    %2192 = vmatpush1.bf16.msra.mxu0 %v1373
    %2193 = vmatprep.subr.bf16.mxu0 %v1380
    %2194 = vmatpush1.bf16.msra.mxu0 %v1379
    %2195 = vmatprep.subr.bf16.mxu0 %v1386
    %2196 = vmatpush1.bf16.msra.mxu0 %v1385
    %2197 = vmatprep.subr.bf16.mxu0 %v1392
    %2198 = vmatpush1.bf16.msra.mxu0 %v1391
    %2199 = vmatprep.subr.bf16.mxu0 %v1398
    %2200 = vmatpush1.bf16.msra.mxu0 %v1397
    %2201 = vmatprep.subr.bf16.mxu0 %v1404
    %2202 = vmatpush1.bf16.msra.mxu0 %v1403
    %2203 = vmatprep.subr.bf16.mxu0 %v1410
    %2204 = vmatpush1.bf16.msra.mxu0 %v1409
    %2205 = vmatprep.subr.bf16.mxu0 %v1416
    %2206 = vmatpush1.bf16.msra.mxu0 %v1415
    %2207 = vmatprep.subr.bf16.mxu0 %v1422
    %2208 = vmatpush1.bf16.msra.mxu0 %v1421
    %2209 = vmatprep.subr.bf16.mxu0 %v1428
    %2210 = vmatpush1.bf16.msra.mxu0 %v1427
    %2211 = vmatprep.subr.bf16.mxu0 %v1434
    %2212 = vmatpush1.bf16.msra.mxu0 %v1433
    %2213 = vmatprep.subr.bf16.mxu0 %v1440
    %2214 = vmatpush1.bf16.msra.mxu0 %v1439
    %2215 = vmatprep.subr.bf16.mxu0 %v1446
    %2216 = vmatpush1.bf16.msra.mxu0 %v1445
    %2217 = vmatprep.subr.bf16.mxu0 %v1452
    %2218 = vmatpush1.bf16.msra.mxu0 %v1451
    %2219 = vmatprep.subr.bf16.mxu0 %v1458
    %2220 = vmatpush1.bf16.msra.mxu0 %v1457
    %2221 = vmatprep.subr.bf16.mxu0 %v1464
    %2222 = vmatpush1.bf16.msra.mxu0 %v1463
    %2223 = vmatprep.mubr.bf16.mxu0 %v180
    %2224 = vmatmul.mubr.bf16.gmra.mrb[0].mxu0 %v179
    %v2225 = vpop.f32.mrb[0].mxu0
    %v2226 = vadd.f32 %v494, %v2225
    %v2227 = vpop.f32.mrb[0].mxu0
    %v2228 = vadd.f32 %v498, %v2227
    %v2229 = vpop.f32.mrb[0].mxu0
    %v2230 = vpop.f32.mrb[0].mxu0
    %2231 = vdwg.mxu0
    %2232 = vmatprep.subr.bf16.mxu0 %v1470
    %2233 = vmatpush1.bf16.msra.mxu0 %v1469
    %2234 = vmatprep.subr.bf16.mxu0 %v1476
    %2235 = vmatpush1.bf16.msra.mxu0 %v1475
    %2236 = vmatprep.subr.bf16.mxu0 %v1482
    %2237 = vmatpush1.bf16.msra.mxu0 %v1481
    %2238 = vmatprep.subr.bf16.mxu0 %v1488
    %2239 = vmatpush1.bf16.msra.mxu0 %v1487
    %2240 = vmatprep.subr.bf16.mxu0 %v1494
    %2241 = vmatpush1.bf16.msra.mxu0 %v1493
    %2242 = vmatprep.subr.bf16.mxu0 %v1500
    %2243 = vmatpush1.bf16.msra.mxu0 %v1499
    %2244 = vmatprep.subr.bf16.mxu0 %v1506
    %2245 = vmatpush1.bf16.msra.mxu0 %v1505
    %2246 = vmatprep.subr.bf16.mxu0 %v1512
    %2247 = vmatpush1.bf16.msra.mxu0 %v1511
    %2248 = vmatprep.subr.bf16.mxu0 %v1518
    %2249 = vmatpush1.bf16.msra.mxu0 %v1517
    %2250 = vmatprep.subr.bf16.mxu0 %v1524
    %2251 = vmatpush1.bf16.msra.mxu0 %v1523
    %2252 = vmatprep.subr.bf16.mxu0 %v1530
    %2253 = vmatpush1.bf16.msra.mxu0 %v1529
    %2254 = vmatprep.subr.bf16.mxu0 %v1536
    %2255 = vmatpush1.bf16.msra.mxu0 %v1535
    %2256 = vmatprep.subr.bf16.mxu0 %v1542
    %2257 = vmatpush1.bf16.msra.mxu0 %v1541
    %2258 = vmatprep.subr.bf16.mxu0 %v1548
    %2259 = vmatpush1.bf16.msra.mxu0 %v1547
    %2260 = vmatprep.subr.bf16.mxu0 %v1554
    %2261 = vmatpush1.bf16.msra.mxu0 %v1553
    %2262 = vmatprep.subr.bf16.mxu0 %v1560
    %2263 = vmatpush1.bf16.msra.mxu0 %v1559
    %2264 = vmatprep.mubr.bf16.mxu0 %v182
    %2265 = vmatmul.mubr.bf16.gmra.mrb[0].mxu0 %v181
    %v2266 = vpop.f32.mrb[0].mxu0
    %v2267 = vadd.f32 %v2226, %v2266
    %v2268 = vpop.f32.mrb[0].mxu0
    %v2269 = vadd.f32 %v2228, %v2268
    %v2270 = vpop.f32.mrb[0].mxu0
    %v2271 = vpop.f32.mrb[0].mxu0
    %2272 = vdwg.mxu0
    %2273 = vmatprep.subr.bf16.mxu0 %v1566
    %2274 = vmatpush1.bf16.msra.mxu0 %v1565
    %2275 = vmatprep.subr.bf16.mxu0 %v1572
    %2276 = vmatpush1.bf16.msra.mxu0 %v1571
    %2277 = vmatprep.subr.bf16.mxu0 %v1578
    %2278 = vmatpush1.bf16.msra.mxu0 %v1577
    %2279 = vmatprep.subr.bf16.mxu0 %v1584
    %2280 = vmatpush1.bf16.msra.mxu0 %v1583
    %2281 = vmatprep.subr.bf16.mxu0 %v1590
    %2282 = vmatpush1.bf16.msra.mxu0 %v1589
    %2283 = vmatprep.subr.bf16.mxu0 %v1596
    %2284 = vmatpush1.bf16.msra.mxu0 %v1595
    %2285 = vmatprep.subr.bf16.mxu0 %v1602
    %2286 = vmatpush1.bf16.msra.mxu0 %v1601
    %2287 = vmatprep.subr.bf16.mxu0 %v1608
    %2288 = vmatpush1.bf16.msra.mxu0 %v1607
    %2289 = vmatprep.subr.bf16.mxu0 %v1614
    %2290 = vmatpush1.bf16.msra.mxu0 %v1613
    %2291 = vmatprep.subr.bf16.mxu0 %v1620
    %2292 = vmatpush1.bf16.msra.mxu0 %v1619
    %2293 = vmatprep.subr.bf16.mxu0 %v1626
    %2294 = vmatpush1.bf16.msra.mxu0 %v1625
    %2295 = vmatprep.subr.bf16.mxu0 %v1632
    %2296 = vmatpush1.bf16.msra.mxu0 %v1631
    %2297 = vmatprep.subr.bf16.mxu0 %v1638
    %2298 = vmatpush1.bf16.msra.mxu0 %v1637
    %2299 = vmatprep.subr.bf16.mxu0 %v1644
    %2300 = vmatpush1.bf16.msra.mxu0 %v1643
    %2301 = vmatprep.subr.bf16.mxu0 %v1650
    %2302 = vmatpush1.bf16.msra.mxu0 %v1649
    %2303 = vmatprep.subr.bf16.mxu0 %v1656
    %2304 = vmatpush1.bf16.msra.mxu0 %v1655
    %2305 = vmatprep.mubr.bf16.mxu0 %v184
    %2306 = vmatmul.mubr.bf16.gmra.mrb[0].mxu0 %v183
    %v2307 = vpop.f32.mrb[0].mxu0
    %v2308 = vadd.f32 %v2267, %v2307
    %v2309 = vpop.f32.mrb[0].mxu0
    %v2310 = vadd.f32 %v2269, %v2309
    %v2311 = vpop.f32.mrb[0].mxu0
    %v2312 = vpop.f32.mrb[0].mxu0
    %2313 = vdwg.mxu0
    %v2314 = vmax.f32 %v2062, 0.0
    %v2315 = vmax.f32 %v2064, 0.0
    %v2316 = vmax.f32 %v2185, 0.0
    %v2317 = vmax.f32 %v2187, 0.0
    %v2318 = vmax.f32 %v2308, 0.0
    %v2319 = vmax.f32 %v2310, 0.0
    %v2320 = vpack.c.bf16 %v2314, %v2314
    %v2321 = vpack.c.bf16 %v2315, %v2315
    %v2322 = vpack.c.bf16 %v2316, %v2316
    %v2323 = vpack.c.bf16 %v2317, %v2317
    %v2324 = vpack.c.bf16 %v2318, %v2318
    %v2325 = vpack.c.bf16 %v2319, %v2319
    %v2326 = vld [vmem:[#allocation8] sm:$0xf]
    %v2327 = vld [vmem:[#allocation8 + $0x4] sm:$0xf]
    %v2328 = vld [vmem:[#allocation8 + $0x8] sm:$0xf]
    %v2329 = vld [vmem:[#allocation8 + $0xc] sm:$0xf]
    %v2330 = vld [vmem:[#allocation8 + $0x10] sm:$0xf]
    %v2331 = vld [vmem:[#allocation8 + $0x14] sm:$0xf]
    %v2332 = vld [vmem:[#allocation8 + $0x18] sm:$0xf]
    %v2333 = vld [vmem:[#allocation8 + $0x1c] sm:$0xf]
    %v2334 = vld [vmem:[#allocation8 + $0x20] sm:$0xf]
    %v2335 = vld [vmem:[#allocation8 + $0x24] sm:$0xf]
    %v2336 = vld [vmem:[#allocation8 + $0x28] sm:$0xf]
    %v2337 = vld [vmem:[#allocation8 + $0x2c] sm:$0xf]
    %v2338 = vld [vmem:[#allocation8 + $0x30] sm:$0xf]
    %v2339 = vld [vmem:[#allocation8 + $0x34] sm:$0xf]
    %v2340 = vld [vmem:[#allocation8 + $0x38] sm:$0xf]
    %v2341 = vld [vmem:[#allocation8 + $0x3c] sm:$0xf]
    %v2342 = vld [vmem:[#allocation8 + $0x40] sm:$0xf]
    %v2343 = vld [vmem:[#allocation8 + $0x44] sm:$0xf]
    %v2344 = vld [vmem:[#allocation8 + $0x48] sm:$0xf]
    %v2345 = vld [vmem:[#allocation8 + $0x4c] sm:$0xf]
    %v2346 = vld [vmem:[#allocation8 + $0x50] sm:$0xf]
    %v2347 = vld [vmem:[#allocation8 + $0x54] sm:$0xf]
    %v2348 = vld [vmem:[#allocation8 + $0x58] sm:$0xf]
    %v2349 = vld [vmem:[#allocation8 + $0x5c] sm:$0xf]
    %v2350 = vld [vmem:[#allocation8 + $0x60] sm:$0xf]
    %v2351 = vld [vmem:[#allocation8 + $0x64] sm:$0xf]
    %v2352 = vld [vmem:[#allocation8 + $0x68] sm:$0xf]
    %v2353 = vld [vmem:[#allocation8 + $0x6c] sm:$0xf]
    %v2354 = vld [vmem:[#allocation8 + $0x70] sm:$0xf]
    %v2355 = vld [vmem:[#allocation8 + $0x74] sm:$0xf]
    %v2356 = vld [vmem:[#allocation8 + $0x78] sm:$0xf]
    %v2357 = vld [vmem:[#allocation8 + $0x7c] sm:$0xf]
    %v2358 = vld [vmem:[#allocation8 + $0x80] sm:$0xf]
    %v2359 = vld [vmem:[#allocation8 + $0x84] sm:$0xf]
    %v2360 = vld [vmem:[#allocation8 + $0x88] sm:$0xf]
    %v2361 = vld [vmem:[#allocation8 + $0x8c] sm:$0xf]
    %v2362 = vld [vmem:[#allocation8 + $0x90] sm:$0xf]
    %v2363 = vld [vmem:[#allocation8 + $0x94] sm:$0xf]
    %v2364 = vld [vmem:[#allocation8 + $0x98] sm:$0xf]
    %v2365 = vld [vmem:[#allocation8 + $0x9c] sm:$0xf]
    %v2366 = vld [vmem:[#allocation8 + $0xa0] sm:$0xf]
    %v2367 = vld [vmem:[#allocation8 + $0xa4] sm:$0xf]
    %v2368 = vld [vmem:[#allocation8 + $0xa8] sm:$0xf]
    %v2369 = vld [vmem:[#allocation8 + $0xac] sm:$0xf]
    %v2370 = vld [vmem:[#allocation8 + $0xb0] sm:$0xf]
    %v2371 = vld [vmem:[#allocation8 + $0xb4] sm:$0xf]
    %v2372 = vld [vmem:[#allocation8 + $0xb8] sm:$0xf]
    %v2373 = vld [vmem:[#allocation8 + $0xbc] sm:$0xf]
    %v2374 = vld [vmem:[#allocation8 + $0xc0] sm:$0xf]
    %v2375 = vld [vmem:[#allocation8 + $0xc4] sm:$0xf]
    %v2376 = vld [vmem:[#allocation8 + $0xc8] sm:$0xf]
    %v2377 = vld [vmem:[#allocation8 + $0xcc] sm:$0xf]
    %v2378 = vld [vmem:[#allocation8 + $0xd0] sm:$0xf]
    %v2379 = vld [vmem:[#allocation8 + $0xd4] sm:$0xf]
    %v2380 = vld [vmem:[#allocation8 + $0xd8] sm:$0xf]
    %v2381 = vld [vmem:[#allocation8 + $0xdc] sm:$0xf]
    %v2382 = vld [vmem:[#allocation8 + $0xe0] sm:$0xf]
    %v2383 = vld [vmem:[#allocation8 + $0xe4] sm:$0xf]
    %v2384 = vld [vmem:[#allocation8 + $0xe8] sm:$0xf]
    %v2385 = vld [vmem:[#allocation8 + $0xec] sm:$0xf]
    %v2386 = vld [vmem:[#allocation8 + $0xf0] sm:$0xf]
    %v2387 = vld [vmem:[#allocation8 + $0xf4] sm:$0xf]
    %v2388 = vld [vmem:[#allocation8 + $0xf8] sm:$0xf]
    %v2389 = vld [vmem:[#allocation8 + $0xfc] sm:$0xf]
    %v2390 = vld [vmem:[#allocation8 + $0x100] sm:$0xf]
    %v2391 = vld [vmem:[#allocation8 + $0x104] sm:$0xf]
    %v2392 = vld [vmem:[#allocation8 + $0x108] sm:$0xf]
    %v2393 = vld [vmem:[#allocation8 + $0x10c] sm:$0xf]
    %v2394 = vld [vmem:[#allocation8 + $0x110] sm:$0xf]
    %v2395 = vld [vmem:[#allocation8 + $0x114] sm:$0xf]
    %v2396 = vld [vmem:[#allocation8 + $0x118] sm:$0xf]
    %v2397 = vld [vmem:[#allocation8 + $0x11c] sm:$0xf]
    %v2398 = vld [vmem:[#allocation8 + $0x120] sm:$0xf]
    %v2399 = vld [vmem:[#allocation8 + $0x124] sm:$0xf]
    %v2400 = vld [vmem:[#allocation8 + $0x128] sm:$0xf]
    %v2401 = vld [vmem:[#allocation8 + $0x12c] sm:$0xf]
    %v2402 = vld [vmem:[#allocation8 + $0x130] sm:$0xf]
    %v2403 = vld [vmem:[#allocation8 + $0x134] sm:$0xf]
    %v2404 = vld [vmem:[#allocation8 + $0x138] sm:$0xf]
    %v2405 = vld [vmem:[#allocation8 + $0x13c] sm:$0xf]
    %v2406 = vld [vmem:[#allocation8 + $0x140] sm:$0xf]
    %v2407 = vld [vmem:[#allocation8 + $0x144] sm:$0xf]
    %v2408 = vld [vmem:[#allocation8 + $0x148] sm:$0xf]
    %v2409 = vld [vmem:[#allocation8 + $0x14c] sm:$0xf]
    %v2410 = vld [vmem:[#allocation8 + $0x150] sm:$0xf]
    %v2411 = vld [vmem:[#allocation8 + $0x154] sm:$0xf]
    %v2412 = vld [vmem:[#allocation8 + $0x158] sm:$0xf]
    %v2413 = vld [vmem:[#allocation8 + $0x15c] sm:$0xf]
    %v2414 = vld [vmem:[#allocation8 + $0x160] sm:$0xf]
    %v2415 = vld [vmem:[#allocation8 + $0x164] sm:$0xf]
    %v2416 = vld [vmem:[#allocation8 + $0x168] sm:$0xf]
    %v2417 = vld [vmem:[#allocation8 + $0x16c] sm:$0xf]
    %v2418 = vld [vmem:[#allocation8 + $0x170] sm:$0xf]
    %v2419 = vld [vmem:[#allocation8 + $0x174] sm:$0xf]
    %v2420 = vld [vmem:[#allocation8 + $0x178] sm:$0xf]
    %v2421 = vld [vmem:[#allocation8 + $0x17c] sm:$0xf]
    %v2422 = vld [vmem:[#allocation9] sm:$0x1]
    %v2424 = vlaneseq
    %v2425 = vshrl.u32 %v2424, 7
    %v2426 = vsub.s32 0, %v2425
    %v2427 = vrot.slane %v2422, %v2426
    %v2525 = vunpack.c.l.b16 %v2326
    %v2526 = vunpack.c.l.b16 %v2327
    %v2527 = vunpack.c.l.b16 %v2328
    %v2528 = vunpack.c.l.b16 %v2329
    %v2529 = vunpack.c.l.b16 %v2330
    %v2530 = vunpack.c.l.b16 %v2331
    %v2531 = vunpack.c.l.b16 %v2332
    %v2532 = vunpack.c.l.b16 %v2333
    %v2533 = vunpack.c.l.b16 %v2334
    %v2534 = vunpack.c.l.b16 %v2335
    %v2535 = vunpack.c.l.b16 %v2336
    %v2536 = vunpack.c.l.b16 %v2337
    %v2537 = vunpack.c.l.b16 %v2338
    %v2538 = vunpack.c.l.b16 %v2339
    %v2539 = vunpack.c.l.b16 %v2340
    %v2540 = vunpack.c.l.b16 %v2341
    %v2541 = vunpack.c.l.b16 %v2342
    %v2542 = vunpack.c.l.b16 %v2343
    %v2543 = vunpack.c.l.b16 %v2344
    %v2544 = vunpack.c.l.b16 %v2345
    %v2545 = vunpack.c.l.b16 %v2346
    %v2546 = vunpack.c.l.b16 %v2347
    %v2547 = vunpack.c.l.b16 %v2348
    %v2548 = vunpack.c.l.b16 %v2349
    %v2549 = vunpack.c.l.b16 %v2350
    %v2550 = vunpack.c.l.b16 %v2351
    %v2551 = vunpack.c.l.b16 %v2352
    %v2552 = vunpack.c.l.b16 %v2353
    %v2553 = vunpack.c.l.b16 %v2354
    %v2554 = vunpack.c.l.b16 %v2355
    %v2555 = vunpack.c.l.b16 %v2356
    %v2556 = vunpack.c.l.b16 %v2357
    %v2557 = vunpack.c.l.b16 %v2358
    %v2558 = vunpack.c.l.b16 %v2359
    %v2559 = vunpack.c.l.b16 %v2360
    %v2560 = vunpack.c.l.b16 %v2361
    %v2561 = vunpack.c.l.b16 %v2362
    %v2562 = vunpack.c.l.b16 %v2363
    %v2563 = vunpack.c.l.b16 %v2364
    %v2564 = vunpack.c.l.b16 %v2365
    %v2565 = vunpack.c.l.b16 %v2366
    %v2566 = vunpack.c.l.b16 %v2367
    %v2567 = vunpack.c.l.b16 %v2368
    %v2568 = vunpack.c.l.b16 %v2369
    %v2569 = vunpack.c.l.b16 %v2370
    %v2570 = vunpack.c.l.b16 %v2371
    %v2571 = vunpack.c.l.b16 %v2372
    %v2572 = vunpack.c.l.b16 %v2373
    %v2573 = vunpack.c.l.b16 %v2374
    %v2574 = vunpack.c.l.b16 %v2375
    %v2575 = vunpack.c.l.b16 %v2376
    %v2576 = vunpack.c.l.b16 %v2377
    %v2577 = vunpack.c.l.b16 %v2378
    %v2578 = vunpack.c.l.b16 %v2379
    %v2579 = vunpack.c.l.b16 %v2380
    %v2580 = vunpack.c.l.b16 %v2381
    %v2581 = vunpack.c.l.b16 %v2382
    %v2582 = vunpack.c.l.b16 %v2383
    %v2583 = vunpack.c.l.b16 %v2384
    %v2584 = vunpack.c.l.b16 %v2385
    %v2585 = vunpack.c.l.b16 %v2386
    %v2586 = vunpack.c.l.b16 %v2387
    %v2587 = vunpack.c.l.b16 %v2388
    %v2588 = vunpack.c.l.b16 %v2389
    %v2589 = vunpack.c.l.b16 %v2390
    %v2590 = vunpack.c.l.b16 %v2391
    %v2591 = vunpack.c.l.b16 %v2392
    %v2592 = vunpack.c.l.b16 %v2393
    %v2593 = vunpack.c.l.b16 %v2394
    %v2594 = vunpack.c.l.b16 %v2395
    %v2595 = vunpack.c.l.b16 %v2396
    %v2596 = vunpack.c.l.b16 %v2397
    %v2597 = vunpack.c.l.b16 %v2398
    %v2598 = vunpack.c.l.b16 %v2399
    %v2599 = vunpack.c.l.b16 %v2400
    %v2600 = vunpack.c.l.b16 %v2401
    %v2601 = vunpack.c.l.b16 %v2402
    %v2602 = vunpack.c.l.b16 %v2403
    %v2603 = vunpack.c.l.b16 %v2404
    %v2604 = vunpack.c.l.b16 %v2405
    %v2605 = vunpack.c.l.b16 %v2406
    %v2606 = vunpack.c.l.b16 %v2407
    %v2607 = vunpack.c.l.b16 %v2408
    %v2608 = vunpack.c.l.b16 %v2409
    %v2609 = vunpack.c.l.b16 %v2410
    %v2610 = vunpack.c.l.b16 %v2411
    %v2611 = vunpack.c.l.b16 %v2412
    %v2612 = vunpack.c.l.b16 %v2413
    %v2613 = vunpack.c.l.b16 %v2414
    %v2614 = vunpack.c.l.b16 %v2415
    %v2615 = vunpack.c.l.b16 %v2416
    %v2616 = vunpack.c.l.b16 %v2417
    %v2617 = vunpack.c.l.b16 %v2418
    %v2618 = vunpack.c.l.b16 %v2419
    %v2619 = vunpack.c.l.b16 %v2420
    %v2620 = vunpack.c.l.b16 %v2421
    %v2621 = vpack.c.b16 %v2526, %v2525
    %v2622 = vpack.c.b16 %v2528, %v2527
    %v2623 = vpack.c.b16 %v2530, %v2529
    %v2624 = vpack.c.b16 %v2532, %v2531
    %v2625 = vpack.c.b16 %v2534, %v2533
    %v2626 = vpack.c.b16 %v2536, %v2535
    %v2627 = vpack.c.b16 %v2538, %v2537
    %v2628 = vpack.c.b16 %v2540, %v2539
    %v2629 = vpack.c.b16 %v2542, %v2541
    %v2630 = vpack.c.b16 %v2544, %v2543
    %v2631 = vpack.c.b16 %v2546, %v2545
    %v2632 = vpack.c.b16 %v2548, %v2547
    %v2633 = vpack.c.b16 %v2550, %v2549
    %v2634 = vpack.c.b16 %v2552, %v2551
    %v2635 = vpack.c.b16 %v2554, %v2553
    %v2636 = vpack.c.b16 %v2556, %v2555
    %v2637 = vpack.c.b16 %v2558, %v2557
    %v2638 = vpack.c.b16 %v2560, %v2559
    %v2639 = vpack.c.b16 %v2562, %v2561
    %v2640 = vpack.c.b16 %v2564, %v2563
    %v2641 = vpack.c.b16 %v2566, %v2565
    %v2642 = vpack.c.b16 %v2568, %v2567
    %v2643 = vpack.c.b16 %v2570, %v2569
    %v2644 = vpack.c.b16 %v2572, %v2571
    %v2645 = vpack.c.b16 %v2574, %v2573
    %v2646 = vpack.c.b16 %v2576, %v2575
    %v2647 = vpack.c.b16 %v2578, %v2577
    %v2648 = vpack.c.b16 %v2580, %v2579
    %v2649 = vpack.c.b16 %v2582, %v2581
    %v2650 = vpack.c.b16 %v2584, %v2583
    %v2651 = vpack.c.b16 %v2586, %v2585
    %v2652 = vpack.c.b16 %v2588, %v2587
    %v2653 = vpack.c.b16 %v2590, %v2589
    %v2654 = vpack.c.b16 %v2592, %v2591
    %v2655 = vpack.c.b16 %v2594, %v2593
    %v2656 = vpack.c.b16 %v2596, %v2595
    %v2657 = vpack.c.b16 %v2598, %v2597
    %v2658 = vpack.c.b16 %v2600, %v2599
    %v2659 = vpack.c.b16 %v2602, %v2601
    %v2660 = vpack.c.b16 %v2604, %v2603
    %v2661 = vpack.c.b16 %v2606, %v2605
    %v2662 = vpack.c.b16 %v2608, %v2607
    %v2663 = vpack.c.b16 %v2610, %v2609
    %v2664 = vpack.c.b16 %v2612, %v2611
    %v2665 = vpack.c.b16 %v2614, %v2613
    %v2666 = vpack.c.b16 %v2616, %v2615
    %v2667 = vpack.c.b16 %v2618, %v2617
    %v2668 = vpack.c.b16 %v2620, %v2619
    %2717 = vmatprep.subr.bf16.mxu0 0
    %2718 = vmatpush1.bf16.msra.mxu0 %v2621
    %2719 = vmatprep.subr.bf16.mxu0 0
    %2720 = vmatpush1.bf16.msra.mxu0 %v2622
    %2721 = vmatprep.subr.bf16.mxu0 0
    %2722 = vmatpush1.bf16.msra.mxu0 %v2623
    %2723 = vmatprep.subr.bf16.mxu0 0
    %2724 = vmatpush1.bf16.msra.mxu0 %v2624
    %2725 = vmatprep.subr.bf16.mxu0 0
    %2726 = vmatpush1.bf16.msra.mxu0 %v2625
    %2727 = vmatprep.subr.bf16.mxu0 0
    %2728 = vmatpush1.bf16.msra.mxu0 %v2626
    %2729 = vmatprep.subr.bf16.mxu0 0
    %2730 = vmatpush1.bf16.msra.mxu0 %v2627
    %2731 = vmatprep.subr.bf16.mxu0 0
    %2732 = vmatpush1.bf16.msra.mxu0 %v2628
    %2733 = vmatprep.subr.bf16.mxu0 0
    %2734 = vmatpush1.bf16.msra.mxu0 %v2629
    %2735 = vmatprep.subr.bf16.mxu0 0
    %2736 = vmatpush1.bf16.msra.mxu0 %v2630
    %2737 = vmatprep.subr.bf16.mxu0 0
    %2738 = vmatpush1.bf16.msra.mxu0 %v2631
    %2739 = vmatprep.subr.bf16.mxu0 0
    %2740 = vmatpush1.bf16.msra.mxu0 %v2632
    %2741 = vmatprep.subr.bf16.mxu0 0
    %2742 = vmatpush1.bf16.msra.mxu0 %v2633
    %2743 = vmatprep.subr.bf16.mxu0 0
    %2744 = vmatpush1.bf16.msra.mxu0 %v2634
    %2745 = vmatprep.subr.bf16.mxu0 0
    %2746 = vmatpush1.bf16.msra.mxu0 %v2635
    %2747 = vmatprep.subr.bf16.mxu0 0
    %2748 = vmatpush1.bf16.msra.mxu0 %v2636
    %2749 = vmatprep.mubr.bf16.mxu0 %v2321
    %2750 = vmatmul.mubr.bf16.gmra.mrb[0].mxu0 %v2320
    %v2751 = vpop.f32.mrb[0].mxu0
    %v2752 = vadd.f32 %v2427, %v2751
    %v2753 = vpop.f32.mrb[0].mxu0
    %v2754 = vpop.f32.mrb[0].mxu0
    %v2755 = vpop.f32.mrb[0].mxu0
    %2756 = vdwg.mxu0
    %2757 = vmatprep.subr.bf16.mxu0 0
    %2758 = vmatpush1.bf16.msra.mxu0 %v2637
    %2759 = vmatprep.subr.bf16.mxu0 0
    %2760 = vmatpush1.bf16.msra.mxu0 %v2638
    %2761 = vmatprep.subr.bf16.mxu0 0
    %2762 = vmatpush1.bf16.msra.mxu0 %v2639
    %2763 = vmatprep.subr.bf16.mxu0 0
    %2764 = vmatpush1.bf16.msra.mxu0 %v2640
    %2765 = vmatprep.subr.bf16.mxu0 0
    %2766 = vmatpush1.bf16.msra.mxu0 %v2641
    %2767 = vmatprep.subr.bf16.mxu0 0
    %2768 = vmatpush1.bf16.msra.mxu0 %v2642
    %2769 = vmatprep.subr.bf16.mxu0 0
    %2770 = vmatpush1.bf16.msra.mxu0 %v2643
    %2771 = vmatprep.subr.bf16.mxu0 0
    %2772 = vmatpush1.bf16.msra.mxu0 %v2644
    %2773 = vmatprep.subr.bf16.mxu0 0
    %2774 = vmatpush1.bf16.msra.mxu0 %v2645
    %2775 = vmatprep.subr.bf16.mxu0 0
    %2776 = vmatpush1.bf16.msra.mxu0 %v2646
    %2777 = vmatprep.subr.bf16.mxu0 0
    %2778 = vmatpush1.bf16.msra.mxu0 %v2647
    %2779 = vmatprep.subr.bf16.mxu0 0
    %2780 = vmatpush1.bf16.msra.mxu0 %v2648
    %2781 = vmatprep.subr.bf16.mxu0 0
    %2782 = vmatpush1.bf16.msra.mxu0 %v2649
    %2783 = vmatprep.subr.bf16.mxu0 0
    %2784 = vmatpush1.bf16.msra.mxu0 %v2650
    %2785 = vmatprep.subr.bf16.mxu0 0
    %2786 = vmatpush1.bf16.msra.mxu0 %v2651
    %2787 = vmatprep.subr.bf16.mxu0 0
    %2788 = vmatpush1.bf16.msra.mxu0 %v2652
    %2789 = vmatprep.mubr.bf16.mxu0 %v2323
    %2790 = vmatmul.mubr.bf16.gmra.mrb[0].mxu0 %v2322
    %v2791 = vpop.f32.mrb[0].mxu0
    %v2792 = vadd.f32 %v2752, %v2791
    %v2793 = vpop.f32.mrb[0].mxu0
    %v2794 = vpop.f32.mrb[0].mxu0
    %v2795 = vpop.f32.mrb[0].mxu0
    %2796 = vdwg.mxu0
    %2797 = vmatprep.subr.bf16.mxu0 0
    %2798 = vmatpush1.bf16.msra.mxu0 %v2653
    %2799 = vmatprep.subr.bf16.mxu0 0
    %2800 = vmatpush1.bf16.msra.mxu0 %v2654
    %2801 = vmatprep.subr.bf16.mxu0 0
    %2802 = vmatpush1.bf16.msra.mxu0 %v2655
    %2803 = vmatprep.subr.bf16.mxu0 0
    %2804 = vmatpush1.bf16.msra.mxu0 %v2656
    %2805 = vmatprep.subr.bf16.mxu0 0
    %2806 = vmatpush1.bf16.msra.mxu0 %v2657
    %2807 = vmatprep.subr.bf16.mxu0 0
    %2808 = vmatpush1.bf16.msra.mxu0 %v2658
    %2809 = vmatprep.subr.bf16.mxu0 0
    %2810 = vmatpush1.bf16.msra.mxu0 %v2659
    %2811 = vmatprep.subr.bf16.mxu0 0
    %2812 = vmatpush1.bf16.msra.mxu0 %v2660
    %2813 = vmatprep.subr.bf16.mxu0 0
    %2814 = vmatpush1.bf16.msra.mxu0 %v2661
    %2815 = vmatprep.subr.bf16.mxu0 0
    %2816 = vmatpush1.bf16.msra.mxu0 %v2662
    %2817 = vmatprep.subr.bf16.mxu0 0
    %2818 = vmatpush1.bf16.msra.mxu0 %v2663
    %2819 = vmatprep.subr.bf16.mxu0 0
    %2820 = vmatpush1.bf16.msra.mxu0 %v2664
    %2821 = vmatprep.subr.bf16.mxu0 0
    %2822 = vmatpush1.bf16.msra.mxu0 %v2665
    %2823 = vmatprep.subr.bf16.mxu0 0
    %2824 = vmatpush1.bf16.msra.mxu0 %v2666
    %2825 = vmatprep.subr.bf16.mxu0 0
    %2826 = vmatpush1.bf16.msra.mxu0 %v2667
    %2827 = vmatprep.subr.bf16.mxu0 0
    %2828 = vmatpush1.bf16.msra.mxu0 %v2668
    %2829 = vmatprep.mubr.bf16.mxu0 %v2325
    %2830 = vmatmul.mubr.bf16.gmra.mrb[0].mxu0 %v2324
    %v2831 = vpop.f32.mrb[0].mxu0
    %v2832 = vadd.f32 %v2792, %v2831
    %v2833 = vpop.f32.mrb[0].mxu0
    %v2834 = vpop.f32.mrb[0].mxu0
    %v2835 = vpop.f32.mrb[0].mxu0
    %2836 = vdwg.mxu0
    %2837 = vst [vmem:[#allocation11] sm:$0xff] %v2832
    // Predicated region
    $region64: #{article_classifier_head.1} parent=1 // pred_check
      _
    $region65: #{article_classifier_head.1} parent=1 // pred_check_branch
      %2839 = sbr.rel (0) target = $region67
    $region66: #{article_classifier_head.1} parent=1 // pred_region
      %s2841 = ssub.s32 128, 32
      %2842 = vsyncadd [#allocation5], %s2841
      %s2843 = sshll.u32 [#allocation11], 4
      %s2844 = int_to_ptr.vmem [resolvable:$true] %s2843
      %2849 = dma.vmem_to_hbm [thread:$0]  %s2844, 32, %s5, [#allocation5], 32, 32, 2
    $region67: #{article_classifier_head.1} parent=1 // pred_fallthru
      _
    // Predicated region
    $region68: #{article_classifier_head.1} parent=1 // pred_check
      _
    $region69: #{article_classifier_head.1} parent=1 // pred_check_branch
      %2851 = sbr.rel (0) target = $region71
    $region70: #{article_classifier_head.1} parent=1 // pred_region
      %2852 = dma.done [#allocation5], 128
    $region71: #{article_classifier_head.1} parent=1 // pred_fallthru
      _
    %2853 = vsyncpa [#allocation4], 1
    %2854 = vsyncpa [#allocation7], 1
    %2855 = vsyncpa [#allocation10], 1
    %2856 = vsyncpa [#allocation5], 1

</llo_original>
